<compile_context>
chip_gen: v7x
topology: tpu7x:2x2x1
jax: 0.10.0
libtpu: 0.0.40
codegen_flags: <defaults>
</compile_context>

<pallas_src>
import math
import warnings

import jax
import jax.numpy as jnp
from jax.experimental import pallas as pl
from jax.experimental.pallas import tpu as pltpu

_LANE = 128
_SUBLANE = 8
_VMEM_BUDGET = None


# ---------------------------------------------------------------------------
# helpers
# ---------------------------------------------------------------------------
def _round_up(n: int, m: int) -> int:
    return ((n + m - 1) // m) * m


def _leaky_relu_01(h):
    return jnp.where(h >= 0, h, 0.1 * h)


def _identity(h):
    return h


def _act_from_name(name: str):
    if name == "relu":
        return lambda h: jnp.maximum(h, 0.0)
    if name == "sigmoid":
        return jax.nn.sigmoid
    if name == "tanh":
        return jnp.tanh
    if name == "leakyrelu":
        return lambda h: jnp.where(h >= 0, h, 0.01 * h)
    if name == "linear":
        return _identity
    warnings.warn(
        f"Activation function of type '{name}' was not recognized. "
        "Activation function was set to 'linear'."
    )
    return _identity


def _vmem_budget_bytes() -> int:
    """Per-chip VMEM budget used for tile sizing and vmem_limit_bytes."""
    global _VMEM_BUDGET
    if _VMEM_BUDGET is None:
        cap = 64 * 1024 * 1024  # v7x-safe fallback
        try:
            info = pltpu.get_tpu_info()
            cap = int(getattr(info, "vmem_capacity_bytes", cap))
        except Exception:
            pass
        _VMEM_BUDGET = max(32 * 1024 * 1024, min(int(cap * 0.7), 100 * 1024 * 1024))
    return _VMEM_BUDGET


def _working_set_bytes(tb, tn, pdims, last_w_buffers):
    """Rough VMEM working-set estimate for one pipelined step."""
    n_layers = len(pdims) - 1
    resident = 0
    for l in range(n_layers - 1):
        resident += pdims[l] * pdims[l + 1] * 2          # bf16 hidden weights
        resident += _SUBLANE * pdims[l + 1] * 4          # f32 bias (sublane-padded)
    last = last_w_buffers * (pdims[n_layers - 1] * tn * 2 + _SUBLANE * tn * 4)
    io = 2 * tb * pdims[0] * 4 + 2 * tb * tn * 4         # double-buffered x / out
    scratch = tb * pdims[n_layers - 1] * 4               # hidden-chain scratch
    live = 2 * tb * max(pdims) * 4                       # headroom for temporaries
    return resident + last + io + scratch + live


def _choose_tiles(rows8, pdims, budget):
    """Pick (row_tile, col_tile, last_weight_buffers) under the VMEM budget."""
    out_p = pdims[-1]
    m = out_p // _LANE
    col_divs = sorted({_LANE * d for d in range(1, m + 1) if m % d == 0}, reverse=True)
    tn = col_divs[-1]
    for cand in col_divs:
        bufs = 1 if cand == out_p else 2
        if _working_set_bytes(_SUBLANE, cand, pdims, bufs) <= budget:
            tn = cand
            break
    last_w_buffers = 1 if tn == out_p else 2

    row_cands = [t for t in (1024, 768, 512, 384, 256, 128, 64, 32, 16, 8) if t <= rows8]
    if rows8 <= 1024 and rows8 not in row_cands:
        row_cands.append(rows8)
    row_cands.sort(reverse=True)
    tb = _SUBLANE
    for cand in row_cands:
        if _working_set_bytes(cand, tn, pdims, last_w_buffers) <= budget:
            tb = cand
            break
    # v7x megacore: prefer >=2 row tiles when it costs zero padding.
    # TODO(synk): query the actual TensorCore count per chip instead of a heuristic.
    if tb >= rows8 and rows8 >= 16 and rows8 % 16 == 0:
        tb = rows8 // 2
    return tb, tn, last_w_buffers


# ---------------------------------------------------------------------------
# Fused multi-layer-perceptron Pallas kernel (prepared once, called many times)
#   y = act_L(... act_1(act_0(x @ W0 + b0) @ W1 + b1) ...)
# ---------------------------------------------------------------------------
class _PreparedMLP:
    """Stack of Linear(+activation) layers, weights pre-padded/pre-cast once."""

    def __init__(self, weights, biases, acts):
        assert len(weights) == len(biases) == len(acts)
        self.n_layers = len(weights)
        self.dims = [weights[0].shape[0]] + [w.shape[1] for w in weights]
        for i, w in enumerate(weights):
            assert w.shape == (self.dims[i], self.dims[i + 1])
        self.pdims = [_round_up(d, _LANE) for d in self.dims]
        self.acts = list(acts)
        # One-time padded, bf16 weights / f32 biases (lane-dense layout).
        self.w_pad, self.b_pad = [], []
        for l in range(self.n_layers):
            wp = (jnp.zeros((self.pdims[l], self.pdims[l + 1]), jnp.bfloat16)
                  .at[:self.dims[l], :self.dims[l + 1]]
                  .set(weights[l].astype(jnp.bfloat16)))
            bp = (jnp.zeros((1, self.pdims[l + 1]), jnp.float32)
                  .at[:, :self.dims[l + 1]]
                  .set(biases[l].reshape(1, -1).astype(jnp.float32)))
            self.w_pad.append(wp)
            self.b_pad.append(bp)

    def __call__(self, x):
        try:
            return self._run(x, single_buffer_weights=True)
        except Exception:
            # TODO(synk): fallback if this runtime rejects pipeline_mode=Buffered(1).
            return self._run(x, single_buffer_weights=False)

    def _run(self, x, single_buffer_weights):
        f32 = jnp.float32
        n_rows, d0 = x.shape
        assert d0 == self.dims[0], (d0, self.dims[0])
        pdims = self.pdims
        n_layers = self.n_layers
        acts = self.acts

        rows8 = _round_up(max(n_rows, 1), _SUBLANE)
        budget = _vmem_budget_bytes()
        tb, tn, _ = _choose_tiles(rows8, pdims, budget)
        rows_pad = _round_up(rows8, tb)
        n_col = pdims[-1] // tn
        grid = (rows_pad // tb, n_col)

        xp = (jnp.zeros((rows_pad, pdims[0]), f32)
              .at[:n_rows, :d0].set(x.astype(f32)))

        def _resident_spec(shape):
            # Constant block index -> stays resident across all grid steps.
            if single_buffer_weights:
                return pl.BlockSpec(shape, lambda i, j: (0, 0),
                                    pipeline_mode=pl.Buffered(buffer_count=1))
            return pl.BlockSpec(shape, lambda i, j: (0, 0))

        operands = [xp]
        in_specs = [pl.BlockSpec((tb, pdims[0]), lambda i, j: (i, 0))]
        for l in range(n_layers - 1):
            operands += [self.w_pad[l], self.b_pad[l]]
            in_specs += [_resident_spec((pdims[l], pdims[l + 1])),
                         _resident_spec((1, pdims[l + 1]))]
        # Last (possibly very wide) layer: column-tiled over the 2nd grid axis.
        operands += [self.w_pad[n_layers - 1], self.b_pad[n_layers - 1]]
        if n_col == 1:
            in_specs += [_resident_spec((pdims[n_layers - 1], tn)),
                         _resident_spec((1, tn))]
        else:
            in_specs += [pl.BlockSpec((pdims[n_layers - 1], tn), lambda i, j: (0, j)),
                         pl.BlockSpec((1, tn), lambda i, j: (0, j))]

        out_spec = pl.BlockSpec((tb, tn), lambda i, j: (i, j))

        def kernel(*refs):
            x_ref = refs[0]
            o_ref = refs[1 + 2 * n_layers]
            h_scr = refs[2 + 2 * n_layers]

            # Hidden chain: computed once per row tile (col index 0), kept in VMEM.
            @pl.when(pl.program_id(1) == 0)
            def _():
                h = x_ref[...]
                for l in range(n_layers - 1):            # static unroll, all in VMEM
                    w = refs[1 + 2 * l][...]
                    b = refs[2 + 2 * l][...]
                    h = jnp.dot(h.astype(jnp.bfloat16), w,
                                preferred_element_type=jnp.float32) + b
                    h = acts[l](h)
                h_scr[...] = h

            w_last = refs[1 + 2 * (n_layers - 1)][...]
            b_last = refs[2 + 2 * (n_layers - 1)][...]
            y = jnp.dot(h_scr[...].astype(jnp.bfloat16), w_last,
                        preferred_element_type=jnp.float32) + b_last
            o_ref[...] = acts[n_layers - 1](y).astype(o_ref.dtype)

        out = pl.pallas_call(
            kernel,
            out_shape=jax.ShapeDtypeStruct((rows_pad, pdims[-1]), f32),
            grid=grid,
            in_specs=in_specs,
            out_specs=out_spec,
            scratch_shapes=[pltpu.VMEM((tb, pdims[n_layers - 1]), jnp.float32)],
            compiler_params=pltpu.CompilerParams(
                dimension_semantics=("parallel", "arbitrary"),
                vmem_limit_bytes=budget,
            ),
        )(*operands)

        return out[:n_rows, :self.dims[-1]]


# ---------------------------------------------------------------------------
# Minimal Autoencoder stand-in (decoder only; real class not in the spec)
# ---------------------------------------------------------------------------
class SimpleLinearAutoencoder:
    TARGET_CHANNELS = 1
    TARGET_TIMESERIES = 2
    TARGET_BOTH = 3

    def __init__(self, input_dim, output_dim, input_dim_2, output_dim_2, key):
        self.target = self.TARGET_BOTH
        self.input_dim = input_dim          # full channel count
        self.output_dim = output_dim        # encoded channel count
        self.input_dim_2 = input_dim_2      # full sequence length
        self.output_dim_2 = output_dim_2    # encoded sequence length
        k_w, k_b = jax.random.split(key)
        fan_in = output_dim * output_dim_2
        bound = 1.0 / math.sqrt(fan_in)
        self.w_dec = jax.random.uniform(
            k_w, (fan_in, input_dim * input_dim_2), jnp.float32, -bound, bound)
        self.b_dec = jax.random.uniform(
            k_b, (input_dim * input_dim_2,), jnp.float32, -bound, bound)
        self._dec_mlp = _PreparedMLP([self.w_dec], [self.b_dec], [_identity])

    def decode(self, x):
        # x: (N, output_dim_2, output_dim) -> (N, input_dim_2, input_dim)
        n = x.shape[0]
        flat = x.reshape(n, self.output_dim_2 * self.output_dim)
        y = self._dec_mlp(flat)
        return y.reshape(n, self.input_dim_2, self.input_dim)

    def decode_reference(self, x):
        n = x.shape[0]
        y = x.reshape(n, -1) @ self.w_dec + self.b_dec
        return y.reshape(n, self.input_dim_2, self.input_dim)


# ---------------------------------------------------------------------------
# AutoencoderGenerator (JAX / Pallas mirror of the PyTorch module)
# ---------------------------------------------------------------------------
class AutoencoderGenerator:
    def __init__(self, latent_dim, autoencoder, *, seq_len=1, hidden_dim=256,
                 num_layers=4, dropout=0.1, activation="tanh", key=None):
        ae = autoencoder
        both_like = (ae.TARGET_CHANNELS, ae.TARGET_BOTH)
        self.output_dim_1 = ae.output_dim if ae.target in both_like else ae.output_dim_2
        self.output_dim_2 = ae.output_dim_2 if ae.target in both_like else ae.output_dim

        self.latent_dim = latent_dim
        self.channels = self.output_dim_1 * self.output_dim_2
        self.seq_len = seq_len
        self.hidden_dim = hidden_dim
        self.num_layers = num_layers
        self.dropout = dropout          # TODO(synk): eval-mode dropout == identity
        self.autoencoder = ae
        self.decode = True
        self.act_out = _act_from_name(activation)

        # Linear stack: latent->hidden, num_layers x hidden->hidden, hidden->channels*seq_len
        dims = [latent_dim] + [hidden_dim] * (num_layers + 1) + [self.channels * seq_len]
        keys = jax.random.split(key, len(dims) - 1)
        self.weights, self.biases = [], []
        for i in range(len(dims) - 1):
            kw, kb = jax.random.split(keys[i])
            bound = 1.0 / math.sqrt(dims[i])
            self.weights.append(
                jax.random.uniform(kw, (dims[i], dims[i + 1]), jnp.float32, -bound, bound))
            self.biases.append(
                jax.random.uniform(kb, (dims[i + 1],), jnp.float32, -bound, bound))
        # PyTorch spec uses nn.LeakyReLU(0.1) for the hidden layers.
        self.acts = [_leaky_relu_01] * (num_layers + 1) + [self.act_out]

        # One-time kernel prep: generator-only stack, and (when seq_len==1 and the
        # autoencoder decoder is a single Linear) a fully fused stack incl. decode.
        self._mlp_no_decode = _PreparedMLP(self.weights, self.biases, self.acts)
        self._mlp_fused = None
        if self.seq_len == 1 and hasattr(ae, "w_dec") and hasattr(ae, "b_dec"):
            self._mlp_fused = _PreparedMLP(
                self.weights + [ae.w_dec], self.biases + [ae.b_dec],
                self.acts + [_identity])

    # --- forward (Pallas) ---------------------------------------------------
    def forward(self, z):
        if self.decode and self._mlp_fused is not None:
            y = self._mlp_fused(z)                        # single fused pallas_call
            ae = self.autoencoder
            return y.reshape(-1, ae.input_dim_2, ae.input_dim)
        y = self._mlp_no_decode(z)
        x = y.reshape(-1, self.seq_len, self.channels)
        if self.decode:
            x = self.autoencoder.decode(
                x.reshape(-1, self.output_dim_2, self.channels // self.output_dim_2))
        return x

    def decode_output(self, mode=True):
        self.decode = mode

    # --- pure-jnp reference (for verification only) --------------------------
    def forward_reference(self, z):
        h = z.astype(jnp.float32)
        for w, b, act in zip(self.weights, self.biases, self.acts):
            h = act(h @ w + b)
        x = h.reshape(-1, self.seq_len, self.channels)
        if self.decode:
            x = self.autoencoder.decode_reference(
                x.reshape(-1, self.output_dim_2, self.channels // self.output_dim_2))
        return x


# ---------------------------------------------------------------------------
# Demo / self-test
# ---------------------------------------------------------------------------
if __name__ == "__main__":
    key = jax.random.PRNGKey(0)
    k_ae, k_gen, k_z = jax.random.split(key, 3)

    batch = 2
    latent_dim = 16
    full_channels = 4        # decoded channel count
    full_seq_len = 16        # decoded sequence length
    enc_channels = 2         # autoencoder.output_dim
    enc_seq_len = 8          # autoencoder.output_dim_2
    hidden_dim = 128         # lane-dense hidden width
    num_layers = 2

    ae = SimpleLinearAutoencoder(full_channels, enc_channels,
                                 full_seq_len, enc_seq_len, k_ae)
    gen = AutoencoderGenerator(latent_dim, ae, seq_len=1, hidden_dim=hidden_dim,
                               num_layers=num_layers, dropout=0.1,
                               activation="tanh", key=k_gen)

    z = jax.random.normal(k_z, (batch, latent_dim), dtype=jnp.float32)

    # decoded path (fused generator + decoder kernel)
    out = jax.block_until_ready(gen.forward(z))
    assert out.shape == (batch, full_seq_len, full_channels), out.shape
    assert out.dtype == jnp.float32
    assert bool(jnp.all(jnp.isfinite(out)))
    ref = gen.forward_reference(z)
    assert bool(jnp.allclose(out, ref, rtol=2e-2, atol=2e-2)), \
        float(jnp.max(jnp.abs(out - ref)))

    # non-decoded path (generator-only kernel)
    gen.decode_output(False)
    out2 = jax.block_until_ready(gen.forward(z))
    ref2 = gen.forward_reference(z)
    assert out2.shape == (batch, 1, enc_channels * enc_seq_len), out2.shape
    assert bool(jnp.allclose(out2, ref2, rtol=2e-2, atol=2e-2)), \
        float(jnp.max(jnp.abs(out2 - ref2)))
    gen.decode_output(True)

    print("KERNEL_OK")
</pallas_src>

<mosaic_0001>
module attributes {stable_mosaic.version = 11 : i64} {
  func.func @kernel(%arg0: i32, %arg1: i32, %arg2: memref<8x128xf32, #tpu.memory_space<vmem>>, %arg3: memref<128x128xbf16, #tpu.memory_space<vmem>>, %arg4: memref<1x128xf32, #tpu.memory_space<vmem>>, %arg5: memref<128x128xbf16, #tpu.memory_space<vmem>>, %arg6: memref<1x128xf32, #tpu.memory_space<vmem>>, %arg7: memref<128x128xbf16, #tpu.memory_space<vmem>>, %arg8: memref<1x128xf32, #tpu.memory_space<vmem>>, %arg9: memref<128x128xbf16, #tpu.memory_space<vmem>>, %arg10: memref<1x128xf32, #tpu.memory_space<vmem>>, %arg11: memref<128x128xbf16, #tpu.memory_space<vmem>>, %arg12: memref<1x128xf32, #tpu.memory_space<vmem>>, %arg13: memref<8x128xf32, #tpu.memory_space<vmem>>, %arg14: memref<8x128xf32, #tpu.memory_space<vmem>>) attributes {dimension_semantics = [#tpu.dimension_semantics<parallel>, #tpu.dimension_semantics<arbitrary>], iteration_bounds = array<i64: 1, 1>, scalar_prefetch = 0 : i64, scratch_operands = 1 : i64, tpu.core_type = #tpu.core_type<tc>, window_params = [{transform_indices = @transform_0, window_bounds = array<i64: 8, 128>}, {pipeline_mode = #tpu.pipeline_mode<synchronous>, transform_indices = @transform_1, window_bounds = array<i64: 128, 128>}, {pipeline_mode = #tpu.pipeline_mode<synchronous>, transform_indices = @transform_2, window_bounds = array<i64: 1, 128>}, {pipeline_mode = #tpu.pipeline_mode<synchronous>, transform_indices = @transform_3, window_bounds = array<i64: 128, 128>}, {pipeline_mode = #tpu.pipeline_mode<synchronous>, transform_indices = @transform_4, window_bounds = array<i64: 1, 128>}, {pipeline_mode = #tpu.pipeline_mode<synchronous>, transform_indices = @transform_5, window_bounds = array<i64: 128, 128>}, {pipeline_mode = #tpu.pipeline_mode<synchronous>, transform_indices = @transform_6, window_bounds = array<i64: 1, 128>}, {pipeline_mode = #tpu.pipeline_mode<synchronous>, transform_indices = @transform_7, window_bounds = array<i64: 128, 128>}, {pipeline_mode = #tpu.pipeline_mode<synchronous>, transform_indices = @transform_8, window_bounds = array<i64: 1, 128>}, {pipeline_mode = #tpu.pipeline_mode<synchronous>, transform_indices = @transform_9, window_bounds = array<i64: 128, 128>}, {pipeline_mode = #tpu.pipeline_mode<synchronous>, transform_indices = @transform_10, window_bounds = array<i64: 1, 128>}, {transform_indices = @transform_11, window_bounds = array<i64: 8, 128>}]} {
    %c0_i32 = arith.constant 0 : i32
    %0 = arith.cmpi eq, %arg1, %c0_i32 : i32
    %1 = arith.extui %0 : i1 to i32
    %c0_i32_0 = arith.constant 0 : i32
    %2 = arith.cmpi ne, %1, %c0_i32_0 : i32
    scf.if %2 {
      %c0_8 = arith.constant 0 : index
      %c0_9 = arith.constant 0 : index
      %11 = vector.load %arg2[%c0_8, %c0_9] : memref<8x128xf32, #tpu.memory_space<vmem>>, vector<8x128xf32>
      %c0_10 = arith.constant 0 : index
      %c0_11 = arith.constant 0 : index
      %12 = vector.load %arg3[%c0_10, %c0_11] : memref<128x128xbf16, #tpu.memory_space<vmem>>, vector<128x128xbf16>
      %c0_12 = arith.constant 0 : index
      %c0_13 = arith.constant 0 : index
      %13 = vector.load %arg4[%c0_12, %c0_13] : memref<1x128xf32, #tpu.memory_space<vmem>>, vector<1x128xf32>
      %14 = arith.truncf %11 : vector<8x128xf32> to vector<8x128xbf16>
      %cst_14 = arith.constant dense<0.000000e+00> : vector<8x128xf32>
      %15 = tpu.matmul %14, %12, %cst_14 {dimension_numbers = #tpu.dot_dimension_numbers<[1], [0], [0], [1], [0, 0, 1, 1], [], []>} : vector<8x128xbf16>, vector<128x128xbf16>, vector<8x128xf32> -> vector<8x128xf32>
      %16 = vector.broadcast %13 : vector<1x128xf32> to vector<8x128xf32>
      %17 = arith.addf %15, %16 : vector<8x128xf32>
      %cst_15 = arith.constant 0.000000e+00 : f32
      %18 = vector.broadcast %cst_15 : f32 to vector<8x128xf32>
      %19 = arith.cmpf oge, %17, %18 : vector<8x128xf32>
      %cst_16 = arith.constant 1.000000e-01 : f32
      %20 = vector.broadcast %cst_16 : f32 to vector<8x128xf32>
      %21 = arith.mulf %20, %17 : vector<8x128xf32>
      %22 = arith.select %19, %17, %21 : vector<8x128xi1>, vector<8x128xf32>
      %c0_17 = arith.constant 0 : index
      %c0_18 = arith.constant 0 : index
      %23 = vector.load %arg5[%c0_17, %c0_18] : memref<128x128xbf16, #tpu.memory_space<vmem>>, vector<128x128xbf16>
      %c0_19 = arith.constant 0 : index
      %c0_20 = arith.constant 0 : index
      %24 = vector.load %arg6[%c0_19, %c0_20] : memref<1x128xf32, #tpu.memory_space<vmem>>, vector<1x128xf32>
      %25 = arith.truncf %22 : vector<8x128xf32> to vector<8x128xbf16>
      %cst_21 = arith.constant dense<0.000000e+00> : vector<8x128xf32>
      %26 = tpu.matmul %25, %23, %cst_21 {dimension_numbers = #tpu.dot_dimension_numbers<[1], [0], [0], [1], [0, 0, 1, 1], [], []>} : vector<8x128xbf16>, vector<128x128xbf16>, vector<8x128xf32> -> vector<8x128xf32>
      %27 = vector.broadcast %24 : vector<1x128xf32> to vector<8x128xf32>
      %28 = arith.addf %26, %27 : vector<8x128xf32>
      %cst_22 = arith.constant 0.000000e+00 : f32
      %29 = vector.broadcast %cst_22 : f32 to vector<8x128xf32>
      %30 = arith.cmpf oge, %28, %29 : vector<8x128xf32>
      %cst_23 = arith.constant 1.000000e-01 : f32
      %31 = vector.broadcast %cst_23 : f32 to vector<8x128xf32>
      %32 = arith.mulf %31, %28 : vector<8x128xf32>
      %33 = arith.select %30, %28, %32 : vector<8x128xi1>, vector<8x128xf32>
      %c0_24 = arith.constant 0 : index
      %c0_25 = arith.constant 0 : index
      %34 = vector.load %arg7[%c0_24, %c0_25] : memref<128x128xbf16, #tpu.memory_space<vmem>>, vector<128x128xbf16>
      %c0_26 = arith.constant 0 : index
      %c0_27 = arith.constant 0 : index
      %35 = vector.load %arg8[%c0_26, %c0_27] : memref<1x128xf32, #tpu.memory_space<vmem>>, vector<1x128xf32>
      %36 = arith.truncf %33 : vector<8x128xf32> to vector<8x128xbf16>
      %cst_28 = arith.constant dense<0.000000e+00> : vector<8x128xf32>
      %37 = tpu.matmul %36, %34, %cst_28 {dimension_numbers = #tpu.dot_dimension_numbers<[1], [0], [0], [1], [0, 0, 1, 1], [], []>} : vector<8x128xbf16>, vector<128x128xbf16>, vector<8x128xf32> -> vector<8x128xf32>
      %38 = vector.broadcast %35 : vector<1x128xf32> to vector<8x128xf32>
      %39 = arith.addf %37, %38 : vector<8x128xf32>
      %cst_29 = arith.constant 0.000000e+00 : f32
      %40 = vector.broadcast %cst_29 : f32 to vector<8x128xf32>
      %41 = arith.cmpf oge, %39, %40 : vector<8x128xf32>
      %cst_30 = arith.constant 1.000000e-01 : f32
      %42 = vector.broadcast %cst_30 : f32 to vector<8x128xf32>
      %43 = arith.mulf %42, %39 : vector<8x128xf32>
      %44 = arith.select %41, %39, %43 : vector<8x128xi1>, vector<8x128xf32>
      %c0_31 = arith.constant 0 : index
      %c0_32 = arith.constant 0 : index
      %45 = vector.load %arg9[%c0_31, %c0_32] : memref<128x128xbf16, #tpu.memory_space<vmem>>, vector<128x128xbf16>
      %c0_33 = arith.constant 0 : index
      %c0_34 = arith.constant 0 : index
      %46 = vector.load %arg10[%c0_33, %c0_34] : memref<1x128xf32, #tpu.memory_space<vmem>>, vector<1x128xf32>
      %47 = arith.truncf %44 : vector<8x128xf32> to vector<8x128xbf16>
      %cst_35 = arith.constant dense<0.000000e+00> : vector<8x128xf32>
      %48 = tpu.matmul %47, %45, %cst_35 {dimension_numbers = #tpu.dot_dimension_numbers<[1], [0], [0], [1], [0, 0, 1, 1], [], []>} : vector<8x128xbf16>, vector<128x128xbf16>, vector<8x128xf32> -> vector<8x128xf32>
      %49 = vector.broadcast %46 : vector<1x128xf32> to vector<8x128xf32>
      %50 = arith.addf %48, %49 : vector<8x128xf32>
      %51 = math.tanh %50 : vector<8x128xf32>
      %c0_36 = arith.constant 0 : index
      %c0_37 = arith.constant 0 : index
      %52 = vector.load %arg14[%c0_36, %c0_37] : memref<8x128xf32, #tpu.memory_space<vmem>>, vector<8x128xf32>
      tpu.vector_store %arg14[%c0_36, %c0_37], %51 {strides = array<i32>} : memref<8x128xf32, #tpu.memory_space<vmem>>, vector<8x128xf32>,
    } else {
    }
    %c0 = arith.constant 0 : index
    %c0_1 = arith.constant 0 : index
    %3 = vector.load %arg11[%c0, %c0_1] : memref<128x128xbf16, #tpu.memory_space<vmem>>, vector<128x128xbf16>
    %c0_2 = arith.constant 0 : index
    %c0_3 = arith.constant 0 : index
    %4 = vector.load %arg12[%c0_2, %c0_3] : memref<1x128xf32, #tpu.memory_space<vmem>>, vector<1x128xf32>
    %c0_4 = arith.constant 0 : index
    %c0_5 = arith.constant 0 : index
    %5 = vector.load %arg14[%c0_4, %c0_5] : memref<8x128xf32, #tpu.memory_space<vmem>>, vector<8x128xf32>
    %6 = arith.truncf %5 : vector<8x128xf32> to vector<8x128xbf16>
    %cst = arith.constant dense<0.000000e+00> : vector<8x128xf32>
    %7 = tpu.matmul %6, %3, %cst {dimension_numbers = #tpu.dot_dimension_numbers<[1], [0], [0], [1], [0, 0, 1, 1], [], []>} : vector<8x128xbf16>, vector<128x128xbf16>, vector<8x128xf32> -> vector<8x128xf32>
    %8 = vector.broadcast %4 : vector<1x128xf32> to vector<8x128xf32>
    %9 = arith.addf %7, %8 : vector<8x128xf32>
    %c0_6 = arith.constant 0 : index
    %c0_7 = arith.constant 0 : index
    %10 = vector.load %arg13[%c0_6, %c0_7] : memref<8x128xf32, #tpu.memory_space<vmem>>, vector<8x128xf32>
    tpu.vector_store %arg13[%c0_6, %c0_7], %9 {strides = array<i32>} : memref<8x128xf32, #tpu.memory_space<vmem>>, vector<8x128xf32>,
    return
  }
  func.func @transform_0(%arg0: i32, %arg1: i32) -> (i32, i32) {
    %c0_i32 = arith.constant 0 : i32
    %c0_i32_0 = arith.constant 0 : i32
    return %arg0, %c0_i32 : i32, i32
  }
  func.func @transform_1(%arg0: i32, %arg1: i32) -> (i32, i32) {
    %c0_i32 = arith.constant 0 : i32
    %c0_i32_0 = arith.constant 0 : i32
    %c0_i32_1 = arith.constant 0 : i32
    return %c0_i32, %c0_i32_0 : i32, i32
  }
  func.func @transform_2(%arg0: i32, %arg1: i32) -> (i32, i32) {
    %c0_i32 = arith.constant 0 : i32
    %c0_i32_0 = arith.constant 0 : i32
    %c0_i32_1 = arith.constant 0 : i32
    return %c0_i32, %c0_i32_0 : i32, i32
  }
  func.func @transform_3(%arg0: i32, %arg1: i32) -> (i32, i32) {
    %c0_i32 = arith.constant 0 : i32
    %c0_i32_0 = arith.constant 0 : i32
    %c0_i32_1 = arith.constant 0 : i32
    return %c0_i32, %c0_i32_0 : i32, i32
  }
  func.func @transform_4(%arg0: i32, %arg1: i32) -> (i32, i32) {
    %c0_i32 = arith.constant 0 : i32
    %c0_i32_0 = arith.constant 0 : i32
    %c0_i32_1 = arith.constant 0 : i32
    return %c0_i32, %c0_i32_0 : i32, i32
  }
  func.func @transform_5(%arg0: i32, %arg1: i32) -> (i32, i32) {
    %c0_i32 = arith.constant 0 : i32
    %c0_i32_0 = arith.constant 0 : i32
    %c0_i32_1 = arith.constant 0 : i32
    return %c0_i32, %c0_i32_0 : i32, i32
  }
  func.func @transform_6(%arg0: i32, %arg1: i32) -> (i32, i32) {
    %c0_i32 = arith.constant 0 : i32
    %c0_i32_0 = arith.constant 0 : i32
    %c0_i32_1 = arith.constant 0 : i32
    return %c0_i32, %c0_i32_0 : i32, i32
  }
  func.func @transform_7(%arg0: i32, %arg1: i32) -> (i32, i32) {
    %c0_i32 = arith.constant 0 : i32
    %c0_i32_0 = arith.constant 0 : i32
    %c0_i32_1 = arith.constant 0 : i32
    return %c0_i32, %c0_i32_0 : i32, i32
  }
  func.func @transform_8(%arg0: i32, %arg1: i32) -> (i32, i32) {
    %c0_i32 = arith.constant 0 : i32
    %c0_i32_0 = arith.constant 0 : i32
    %c0_i32_1 = arith.constant 0 : i32
    return %c0_i32, %c0_i32_0 : i32, i32
  }
  func.func @transform_9(%arg0: i32, %arg1: i32) -> (i32, i32) {
    %c0_i32 = arith.constant 0 : i32
    %c0_i32_0 = arith.constant 0 : i32
    %c0_i32_1 = arith.constant 0 : i32
    return %c0_i32, %c0_i32_0 : i32, i32
  }
  func.func @transform_10(%arg0: i32, %arg1: i32) -> (i32, i32) {
    %c0_i32 = arith.constant 0 : i32
    %c0_i32_0 = arith.constant 0 : i32
    %c0_i32_1 = arith.constant 0 : i32
    return %c0_i32, %c0_i32_0 : i32, i32
  }
  func.func @transform_11(%arg0: i32, %arg1: i32) -> (i32, i32) {
    %c0_i32 = arith.constant 0 : i32
    return %arg0, %arg1 : i32, i32
  }
}

module attributes {stable_mosaic.version = 11 : i64} {
  func.func @kernel(%arg0: i32, %arg1: i32, %arg2: memref<8x128xf32, #tpu.memory_space<vmem>>, %arg3: memref<128x128xbf16, #tpu.memory_space<vmem>>, %arg4: memref<1x128xf32, #tpu.memory_space<vmem>>, %arg5: memref<128x128xbf16, #tpu.memory_space<vmem>>, %arg6: memref<1x128xf32, #tpu.memory_space<vmem>>, %arg7: memref<128x128xbf16, #tpu.memory_space<vmem>>, %arg8: memref<1x128xf32, #tpu.memory_space<vmem>>, %arg9: memref<128x128xbf16, #tpu.memory_space<vmem>>, %arg10: memref<1x128xf32, #tpu.memory_space<vmem>>, %arg11: memref<128x128xbf16, #tpu.memory_space<vmem>>, %arg12: memref<1x128xf32, #tpu.memory_space<vmem>>, %arg13: memref<8x128xf32, #tpu.memory_space<vmem>>, %arg14: memref<8x128xf32, #tpu.memory_space<vmem>>) attributes {dimension_semantics = [#tpu.dimension_semantics<parallel>, #tpu.dimension_semantics<arbitrary>], iteration_bounds = array<i64: 1, 1>, scalar_prefetch = 0 : i64, scratch_operands = 1 : i64, tpu.core_type = #tpu.core_type<tc>, window_params = [{transform_indices = @transform_0, window_bounds = array<i64: 8, 128>}, {pipeline_mode = #tpu.pipeline_mode<synchronous>, transform_indices = @transform_1, window_bounds = array<i64: 128, 128>}, {pipeline_mode = #tpu.pipeline_mode<synchronous>, transform_indices = @transform_2, window_bounds = array<i64: 1, 128>}, {pipeline_mode = #tpu.pipeline_mode<synchronous>, transform_indices = @transform_3, window_bounds = array<i64: 128, 128>}, {pipeline_mode = #tpu.pipeline_mode<synchronous>, transform_indices = @transform_4, window_bounds = array<i64: 1, 128>}, {pipeline_mode = #tpu.pipeline_mode<synchronous>, transform_indices = @transform_5, window_bounds = array<i64: 128, 128>}, {pipeline_mode = #tpu.pipeline_mode<synchronous>, transform_indices = @transform_6, window_bounds = array<i64: 1, 128>}, {pipeline_mode = #tpu.pipeline_mode<synchronous>, transform_indices = @transform_7, window_bounds = array<i64: 128, 128>}, {pipeline_mode = #tpu.pipeline_mode<synchronous>, transform_indices = @transform_8, window_bounds = array<i64: 1, 128>}, {pipeline_mode = #tpu.pipeline_mode<synchronous>, transform_indices = @transform_9, window_bounds = array<i64: 128, 128>}, {pipeline_mode = #tpu.pipeline_mode<synchronous>, transform_indices = @transform_10, window_bounds = array<i64: 1, 128>}, {transform_indices = @transform_11, window_bounds = array<i64: 8, 128>}]} {
    %c0_i32 = arith.constant 0 : i32
    %0 = arith.cmpi eq, %arg1, %c0_i32 : i32
    %1 = arith.extui %0 : i1 to i32
    %c0_i32_0 = arith.constant 0 : i32
    %2 = arith.cmpi ne, %1, %c0_i32_0 : i32
    scf.if %2 {
      %c0_8 = arith.constant 0 : index
      %c0_9 = arith.constant 0 : index
      %11 = vector.load %arg2[%c0_8, %c0_9] : memref<8x128xf32, #tpu.memory_space<vmem>>, vector<8x128xf32>
      %c0_10 = arith.constant 0 : index
      %c0_11 = arith.constant 0 : index
      %12 = vector.load %arg3[%c0_10, %c0_11] : memref<128x128xbf16, #tpu.memory_space<vmem>>, vector<128x128xbf16>
      %c0_12 = arith.constant 0 : index
      %c0_13 = arith.constant 0 : index
      %13 = vector.load %arg4[%c0_12, %c0_13] : memref<1x128xf32, #tpu.memory_space<vmem>>, vector<1x128xf32>
      %14 = arith.truncf %11 : vector<8x128xf32> to vector<8x128xbf16>
      %cst_14 = arith.constant dense<0.000000e+00> : vector<8x128xf32>
      %15 = tpu.matmul %14, %12, %cst_14 {dimension_numbers = #tpu.dot_dimension_numbers<[1], [0], [0], [1], [0, 0, 1, 1], [], []>} : vector<8x128xbf16>, vector<128x128xbf16>, vector<8x128xf32> -> vector<8x128xf32>
      %16 = vector.broadcast %13 : vector<1x128xf32> to vector<8x128xf32>
      %17 = arith.addf %15, %16 : vector<8x128xf32>
      %cst_15 = arith.constant 0.000000e+00 : f32
      %18 = vector.broadcast %cst_15 : f32 to vector<8x128xf32>
      %19 = arith.cmpf oge, %17, %18 : vector<8x128xf32>
      %cst_16 = arith.constant 1.000000e-01 : f32
      %20 = vector.broadcast %cst_16 : f32 to vector<8x128xf32>
      %21 = arith.mulf %20, %17 : vector<8x128xf32>
      %22 = arith.select %19, %17, %21 : vector<8x128xi1>, vector<8x128xf32>
      %c0_17 = arith.constant 0 : index
      %c0_18 = arith.constant 0 : index
      %23 = vector.load %arg5[%c0_17, %c0_18] : memref<128x128xbf16, #tpu.memory_space<vmem>>, vector<128x128xbf16>
      %c0_19 = arith.constant 0 : index
      %c0_20 = arith.constant 0 : index
      %24 = vector.load %arg6[%c0_19, %c0_20] : memref<1x128xf32, #tpu.memory_space<vmem>>, vector<1x128xf32>
      %25 = arith.truncf %22 : vector<8x128xf32> to vector<8x128xbf16>
      %cst_21 = arith.constant dense<0.000000e+00> : vector<8x128xf32>
      %26 = tpu.matmul %25, %23, %cst_21 {dimension_numbers = #tpu.dot_dimension_numbers<[1], [0], [0], [1], [0, 0, 1, 1], [], []>} : vector<8x128xbf16>, vector<128x128xbf16>, vector<8x128xf32> -> vector<8x128xf32>
      %27 = vector.broadcast %24 : vector<1x128xf32> to vector<8x128xf32>
      %28 = arith.addf %26, %27 : vector<8x128xf32>
      %cst_22 = arith.constant 0.000000e+00 : f32
      %29 = vector.broadcast %cst_22 : f32 to vector<8x128xf32>
      %30 = arith.cmpf oge, %28, %29 : vector<8x128xf32>
      %cst_23 = arith.constant 1.000000e-01 : f32
      %31 = vector.broadcast %cst_23 : f32 to vector<8x128xf32>
      %32 = arith.mulf %31, %28 : vector<8x128xf32>
      %33 = arith.select %30, %28, %32 : vector<8x128xi1>, vector<8x128xf32>
      %c0_24 = arith.constant 0 : index
      %c0_25 = arith.constant 0 : index
      %34 = vector.load %arg7[%c0_24, %c0_25] : memref<128x128xbf16, #tpu.memory_space<vmem>>, vector<128x128xbf16>
      %c0_26 = arith.constant 0 : index
      %c0_27 = arith.constant 0 : index
      %35 = vector.load %arg8[%c0_26, %c0_27] : memref<1x128xf32, #tpu.memory_space<vmem>>, vector<1x128xf32>
      %36 = arith.truncf %33 : vector<8x128xf32> to vector<8x128xbf16>
      %cst_28 = arith.constant dense<0.000000e+00> : vector<8x128xf32>
      %37 = tpu.matmul %36, %34, %cst_28 {dimension_numbers = #tpu.dot_dimension_numbers<[1], [0], [0], [1], [0, 0, 1, 1], [], []>} : vector<8x128xbf16>, vector<128x128xbf16>, vector<8x128xf32> -> vector<8x128xf32>
      %38 = vector.broadcast %35 : vector<1x128xf32> to vector<8x128xf32>
      %39 = arith.addf %37, %38 : vector<8x128xf32>
      %cst_29 = arith.constant 0.000000e+00 : f32
      %40 = vector.broadcast %cst_29 : f32 to vector<8x128xf32>
      %41 = arith.cmpf oge, %39, %40 : vector<8x128xf32>
      %cst_30 = arith.constant 1.000000e-01 : f32
      %42 = vector.broadcast %cst_30 : f32 to vector<8x128xf32>
      %43 = arith.mulf %42, %39 : vector<8x128xf32>
      %44 = arith.select %41, %39, %43 : vector<8x128xi1>, vector<8x128xf32>
      %c0_31 = arith.constant 0 : index
      %c0_32 = arith.constant 0 : index
      %45 = vector.load %arg9[%c0_31, %c0_32] : memref<128x128xbf16, #tpu.memory_space<vmem>>, vector<128x128xbf16>
      %c0_33 = arith.constant 0 : index
      %c0_34 = arith.constant 0 : index
      %46 = vector.load %arg10[%c0_33, %c0_34] : memref<1x128xf32, #tpu.memory_space<vmem>>, vector<1x128xf32>
      %47 = arith.truncf %44 : vector<8x128xf32> to vector<8x128xbf16>
      %cst_35 = arith.constant dense<0.000000e+00> : vector<8x128xf32>
      %48 = tpu.matmul %47, %45, %cst_35 {dimension_numbers = #tpu.dot_dimension_numbers<[1], [0], [0], [1], [0, 0, 1, 1], [], []>} : vector<8x128xbf16>, vector<128x128xbf16>, vector<8x128xf32> -> vector<8x128xf32>
      %49 = vector.broadcast %46 : vector<1x128xf32> to vector<8x128xf32>
      %50 = arith.addf %48, %49 : vector<8x128xf32>
      %51 = math.tanh %50 : vector<8x128xf32>
      %c0_36 = arith.constant 0 : index
      %c0_37 = arith.constant 0 : index
      %52 = vector.load %arg14[%c0_36, %c0_37] : memref<8x128xf32, #tpu.memory_space<vmem>>, vector<8x128xf32>
      tpu.vector_store %arg14[%c0_36, %c0_37], %51 {strides = array<i32>} : memref<8x128xf32, #tpu.memory_space<vmem>>, vector<8x128xf32>,
    } else {
    }
    %c0 = arith.constant 0 : index
    %c0_1 = arith.constant 0 : index
    %3 = vector.load %arg11[%c0, %c0_1] : memref<128x128xbf16, #tpu.memory_space<vmem>>, vector<128x128xbf16>
    %c0_2 = arith.constant 0 : index
    %c0_3 = arith.constant 0 : index
    %4 = vector.load %arg12[%c0_2, %c0_3] : memref<1x128xf32, #tpu.memory_space<vmem>>, vector<1x128xf32>
    %c0_4 = arith.constant 0 : index
    %c0_5 = arith.constant 0 : index
    %5 = vector.load %arg14[%c0_4, %c0_5] : memref<8x128xf32, #tpu.memory_space<vmem>>, vector<8x128xf32>
    %6 = arith.truncf %5 : vector<8x128xf32> to vector<8x128xbf16>
    %cst = arith.constant dense<0.000000e+00> : vector<8x128xf32>
    %7 = tpu.matmul %6, %3, %cst {dimension_numbers = #tpu.dot_dimension_numbers<[1], [0], [0], [1], [0, 0, 1, 1], [], []>} : vector<8x128xbf16>, vector<128x128xbf16>, vector<8x128xf32> -> vector<8x128xf32>
    %8 = vector.broadcast %4 : vector<1x128xf32> to vector<8x128xf32>
    %9 = arith.addf %7, %8 : vector<8x128xf32>
    %c0_6 = arith.constant 0 : index
    %c0_7 = arith.constant 0 : index
    %10 = vector.load %arg13[%c0_6, %c0_7] : memref<8x128xf32, #tpu.memory_space<vmem>>, vector<8x128xf32>
    tpu.vector_store %arg13[%c0_6, %c0_7], %9 {strides = array<i32>} : memref<8x128xf32, #tpu.memory_space<vmem>>, vector<8x128xf32>,
    return
  }
  func.func @transform_0(%arg0: i32, %arg1: i32) -> (i32, i32) {
    %c0_i32 = arith.constant 0 : i32
    %c0_i32_0 = arith.constant 0 : i32
    return %arg0, %c0_i32 : i32, i32
  }
  func.func @transform_1(%arg0: i32, %arg1: i32) -> (i32, i32) {
    %c0_i32 = arith.constant 0 : i32
    %c0_i32_0 = arith.constant 0 : i32
    %c0_i32_1 = arith.constant 0 : i32
    return %c0_i32, %c0_i32_0 : i32, i32
  }
  func.func @transform_2(%arg0: i32, %arg1: i32) -> (i32, i32) {
    %c0_i32 = arith.constant 0 : i32
    %c0_i32_0 = arith.constant 0 : i32
    %c0_i32_1 = arith.constant 0 : i32
    return %c0_i32, %c0_i32_0 : i32, i32
  }
  func.func @transform_3(%arg0: i32, %arg1: i32) -> (i32, i32) {
    %c0_i32 = arith.constant 0 : i32
    %c0_i32_0 = arith.constant 0 : i32
    %c0_i32_1 = arith.constant 0 : i32
    return %c0_i32, %c0_i32_0 : i32, i32
  }
  func.func @transform_4(%arg0: i32, %arg1: i32) -> (i32, i32) {
    %c0_i32 = arith.constant 0 : i32
    %c0_i32_0 = arith.constant 0 : i32
    %c0_i32_1 = arith.constant 0 : i32
    return %c0_i32, %c0_i32_0 : i32, i32
  }
  func.func @transform_5(%arg0: i32, %arg1: i32) -> (i32, i32) {
    %c0_i32 = arith.constant 0 : i32
    %c0_i32_0 = arith.constant 0 : i32
    %c0_i32_1 = arith.constant 0 : i32
    return %c0_i32, %c0_i32_0 : i32, i32
  }
  func.func @transform_6(%arg0: i32, %arg1: i32) -> (i32, i32) {
    %c0_i32 = arith.constant 0 : i32
    %c0_i32_0 = arith.constant 0 : i32
    %c0_i32_1 = arith.constant 0 : i32
    return %c0_i32, %c0_i32_0 : i32, i32
  }
  func.func @transform_7(%arg0: i32, %arg1: i32) -> (i32, i32) {
    %c0_i32 = arith.constant 0 : i32
    %c0_i32_0 = arith.constant 0 : i32
    %c0_i32_1 = arith.constant 0 : i32
    return %c0_i32, %c0_i32_0 : i32, i32
  }
  func.func @transform_8(%arg0: i32, %arg1: i32) -> (i32, i32) {
    %c0_i32 = arith.constant 0 : i32
    %c0_i32_0 = arith.constant 0 : i32
    %c0_i32_1 = arith.constant 0 : i32
    return %c0_i32, %c0_i32_0 : i32, i32
  }
  func.func @transform_9(%arg0: i32, %arg1: i32) -> (i32, i32) {
    %c0_i32 = arith.constant 0 : i32
    %c0_i32_0 = arith.constant 0 : i32
    %c0_i32_1 = arith.constant 0 : i32
    return %c0_i32, %c0_i32_0 : i32, i32
  }
  func.func @transform_10(%arg0: i32, %arg1: i32) -> (i32, i32) {
    %c0_i32 = arith.constant 0 : i32
    %c0_i32_0 = arith.constant 0 : i32
    %c0_i32_1 = arith.constant 0 : i32
    return %c0_i32, %c0_i32_0 : i32, i32
  }
  func.func @transform_11(%arg0: i32, %arg1: i32) -> (i32, i32) {
    %c0_i32 = arith.constant 0 : i32
    return %arg0, %arg1 : i32, i32
  }
}

</mosaic_0001>

<llo_original>
// kernel: tpu_custom_call.1
$region0: #{tpu_custom_call.1}
  #allocation0 [shape = 'u32[]', space=smem, size = 0x4, offset = 0x4, fixed_abs, tag = 'smem constant byte address 0x4 - core index']
  #allocation1 [shape = 'u32[144,128]{1,0:T(1,128)}', space=vmem, size = 0x12000, scoped, tag = 'internal scratch']
  #allocation2 [shape = 'f32[8,128]{1,0:T(8,128)}', space=vmem, size = 0x1000, scoped, tag = 'scratch operand']
  %s0 = inlined_call_operand.hbm [shape: f32[8,128], index: 0, kind: input, shape index: {}]
  %s1 = inlined_call_operand.hbm [shape: bf16[128,128], index: 1, kind: input, shape index: {}]
  %s2 = inlined_call_operand.vmem [shape: f32[1,128], index: 2, kind: input, shape index: {}]
  %s3 = inlined_call_operand.hbm [shape: bf16[128,128], index: 3, kind: input, shape index: {}]
  %s4 = inlined_call_operand.vmem [shape: f32[1,128], index: 4, kind: input, shape index: {}]
  %s5 = inlined_call_operand.hbm [shape: bf16[128,128], index: 5, kind: input, shape index: {}]
  %s6 = inlined_call_operand.vmem [shape: f32[1,128], index: 6, kind: input, shape index: {}]
  %s7 = inlined_call_operand.hbm [shape: bf16[128,128], index: 7, kind: input, shape index: {}]
  %s8 = inlined_call_operand.vmem [shape: f32[1,128], index: 8, kind: input, shape index: {}]
  %s9 = inlined_call_operand.hbm [shape: bf16[128,128], index: 9, kind: input, shape index: {}]
  %s10 = inlined_call_operand.vmem [shape: f32[1,128], index: 10, kind: input, shape index: {}]
  %s11 = inlined_call_operand.hbm [shape: f32[8,128], index: 11, kind: output, shape index: {}]
  %s12 = sld [smem:[#allocation0]]
  $region82: #{tpu_custom_call.1} parent=0
    _
  %s14 = ssub.s32 1, %s12
  %s15 = scalar_select 0, %s14, %s12
  $region1: #{tpu_custom_call.1} parent=0
    #allocation3 [shape = 'u8[4096]{0}', space=vmem, size = 0x1000, scoped, tag = 'input window, operand 0, single buffered']
    #allocation4 [shape = 's32[1]{0}', space=sflag, size = 0x4, scoped, tag = 'scoped memory for tpu_custom_call.1']
    #allocation5 [shape = 's32[1]{0}', space=sflag, size = 0x4, scoped, tag = 'scoped memory for tpu_custom_call.1']
    #allocation6 [shape = 'u8[32768]{0}', space=vmem, size = 0x8000, scoped, tag = 'input window, operand 1, single buffered']
    #allocation7 [shape = 's32[1]{0}', space=sflag, size = 0x4, scoped, tag = 'scoped memory for tpu_custom_call.1']
    #allocation8 [shape = 'u8[32768]{0}', space=vmem, size = 0x8000, scoped, tag = 'input window, operand 3, single buffered']
    #allocation9 [shape = 'u8[32768]{0}', space=vmem, size = 0x8000, scoped, tag = 'input window, operand 5, single buffered']
    #allocation10 [shape = 's32[1]{0}', space=sflag, size = 0x4, scoped, tag = 'scoped memory for tpu_custom_call.1']
    #allocation11 [shape = 'u8[32768]{0}', space=vmem, size = 0x8000, scoped, tag = 'input window, operand 7, single buffered']
    #allocation12 [shape = 'u8[32768]{0}', space=vmem, size = 0x8000, scoped, tag = 'input window, operand 9, single buffered']
    #allocation13 [shape = 's32[1]{0}', space=sflag, size = 0x4, scoped, tag = 'scoped memory for tpu_custom_call.1']
    #allocation14 [shape = 'u8[4096]{0}', space=vmem, size = 0x1000, scoped, tag = 'output window, operand 0, single buffered']
    %16 = vsyncpa [#allocation4], 0
    %17 = vsyncpa [#allocation7], 0
    %18 = vsyncpa [#allocation10], 0
    %19 = vsyncpa [#allocation13], 0
    %20 = vsyncpa [#allocation5], 0
    // Predicated region
    $region2: #{tpu_custom_call.1} parent=1 // pred_check
      _
    $region3: #{tpu_custom_call.1} parent=1 // pred_check_branch
      %22 = sbr.rel (0) target = $region5
    $region4: #{tpu_custom_call.1} parent=1 // pred_region
      %s24 = ssub.s32 128, 128
      %25 = vsyncadd [#allocation4], %s24
      %s27 = sshll.u32 [#allocation3], 4
      %s28 = int_to_ptr.vmem [resolvable:$true] %s27
      %30 = dma.hbm_to_vmem [thread:$0]  %s0, 128, %s28, [#allocation4]
    $region5: #{tpu_custom_call.1} parent=1 // pred_fallthru
      _
    // Predicated region
    $region6: #{tpu_custom_call.1} parent=1 // pred_check
      _
    $region7: #{tpu_custom_call.1} parent=1 // pred_check_branch
      %32 = sbr.rel (0) target = $region9
    $region8: #{tpu_custom_call.1} parent=1 // pred_region
      %s34 = ssub.s32 1024, 1024
      %35 = vsyncadd [#allocation7], %s34
      %s36 = sshll.u32 [#allocation6], 4
      %s37 = int_to_ptr.vmem [resolvable:$true] %s36
      %42 = dma.hbm_to_vmem [thread:$0]  %s1, 1024, %s37, [#allocation7], 64, 64, 4
    $region9: #{tpu_custom_call.1} parent=1 // pred_fallthru
      _
    // Predicated region
    $region10: #{tpu_custom_call.1} parent=1 // pred_check
      _
    $region11: #{tpu_custom_call.1} parent=1 // pred_check_branch
      %44 = sbr.rel (0) target = $region13
    $region12: #{tpu_custom_call.1} parent=1 // pred_region
      _
    $region13: #{tpu_custom_call.1} parent=1 // pred_fallthru
      _
    // Predicated region
    $region14: #{tpu_custom_call.1} parent=1 // pred_check
      _
    $region15: #{tpu_custom_call.1} parent=1 // pred_check_branch
      %46 = sbr.rel (0) target = $region17
    $region16: #{tpu_custom_call.1} parent=1 // pred_region
      %s48 = ssub.s32 1024, 1024
      %49 = vsyncadd [#allocation7], %s48
      %s50 = sshll.u32 [#allocation8], 4
      %s51 = int_to_ptr.vmem [resolvable:$true] %s50
      %56 = dma.hbm_to_vmem [thread:$0]  %s3, 1024, %s51, [#allocation7], 64, 64, 4
    $region17: #{tpu_custom_call.1} parent=1 // pred_fallthru
      _
    // Predicated region
    $region18: #{tpu_custom_call.1} parent=1 // pred_check
      _
    $region19: #{tpu_custom_call.1} parent=1 // pred_check_branch
      %58 = sbr.rel (0) target = $region21
    $region20: #{tpu_custom_call.1} parent=1 // pred_region
      _
    $region21: #{tpu_custom_call.1} parent=1 // pred_fallthru
      _
    // Predicated region
    $region22: #{tpu_custom_call.1} parent=1 // pred_check
      _
    $region23: #{tpu_custom_call.1} parent=1 // pred_check_branch
      %60 = sbr.rel (0) target = $region25
    $region24: #{tpu_custom_call.1} parent=1 // pred_region
      %s62 = ssub.s32 1024, 1024
      %63 = vsyncadd [#allocation10], %s62
      %s64 = sshll.u32 [#allocation9], 4
      %s65 = int_to_ptr.vmem [resolvable:$true] %s64
      %70 = dma.hbm_to_vmem [thread:$0]  %s5, 1024, %s65, [#allocation10], 64, 64, 4
    $region25: #{tpu_custom_call.1} parent=1 // pred_fallthru
      _
    // Predicated region
    $region26: #{tpu_custom_call.1} parent=1 // pred_check
      _
    $region27: #{tpu_custom_call.1} parent=1 // pred_check_branch
      %72 = sbr.rel (0) target = $region29
    $region28: #{tpu_custom_call.1} parent=1 // pred_region
      _
    $region29: #{tpu_custom_call.1} parent=1 // pred_fallthru
      _
    // Predicated region
    $region30: #{tpu_custom_call.1} parent=1 // pred_check
      _
    $region31: #{tpu_custom_call.1} parent=1 // pred_check_branch
      %74 = sbr.rel (0) target = $region33
    $region32: #{tpu_custom_call.1} parent=1 // pred_region
      %s76 = ssub.s32 1024, 1024
      %77 = vsyncadd [#allocation10], %s76
      %s78 = sshll.u32 [#allocation11], 4
      %s79 = int_to_ptr.vmem [resolvable:$true] %s78
      %84 = dma.hbm_to_vmem [thread:$0]  %s7, 1024, %s79, [#allocation10], 64, 64, 4
    $region33: #{tpu_custom_call.1} parent=1 // pred_fallthru
      _
    // Predicated region
    $region34: #{tpu_custom_call.1} parent=1 // pred_check
      _
    $region35: #{tpu_custom_call.1} parent=1 // pred_check_branch
      %86 = sbr.rel (0) target = $region37
    $region36: #{tpu_custom_call.1} parent=1 // pred_region
      _
    $region37: #{tpu_custom_call.1} parent=1 // pred_fallthru
      _
    // Predicated region
    $region38: #{tpu_custom_call.1} parent=1 // pred_check
      _
    $region39: #{tpu_custom_call.1} parent=1 // pred_check_branch
      %88 = sbr.rel (0) target = $region41
    $region40: #{tpu_custom_call.1} parent=1 // pred_region
      %s90 = ssub.s32 1024, 1024
      %91 = vsyncadd [#allocation13], %s90
      %s92 = sshll.u32 [#allocation12], 4
      %s93 = int_to_ptr.vmem [resolvable:$true] %s92
      %98 = dma.hbm_to_vmem [thread:$0]  %s9, 1024, %s93, [#allocation13], 64, 64, 4
    $region41: #{tpu_custom_call.1} parent=1 // pred_fallthru
      _
    // Predicated region
    $region42: #{tpu_custom_call.1} parent=1 // pred_check
      _
    $region43: #{tpu_custom_call.1} parent=1 // pred_check_branch
      %100 = sbr.rel (0) target = $region45
    $region44: #{tpu_custom_call.1} parent=1 // pred_region
      _
    $region45: #{tpu_custom_call.1} parent=1 // pred_fallthru
      _
    // Predicated region
    $region46: #{tpu_custom_call.1} parent=1 // pred_check
      _
    $region47: #{tpu_custom_call.1} parent=1 // pred_check_branch
      %102 = sbr.rel (0) target = $region49
    $region48: #{tpu_custom_call.1} parent=1 // pred_region
      %103 = dma.done [#allocation4], 128
    $region49: #{tpu_custom_call.1} parent=1 // pred_fallthru
      _
    // Predicated region
    $region50: #{tpu_custom_call.1} parent=1 // pred_check
      _
    $region51: #{tpu_custom_call.1} parent=1 // pred_check_branch
      %105 = sbr.rel (0) target = $region53
    $region52: #{tpu_custom_call.1} parent=1 // pred_region
      %106 = dma.done [#allocation7], 1024
    $region53: #{tpu_custom_call.1} parent=1 // pred_fallthru
      _
    // Predicated region
    $region54: #{tpu_custom_call.1} parent=1 // pred_check
      _
    $region55: #{tpu_custom_call.1} parent=1 // pred_check_branch
      %108 = sbr.rel (0) target = $region57
    $region56: #{tpu_custom_call.1} parent=1 // pred_region
      %109 = dma.done [#allocation7], 1024
    $region57: #{tpu_custom_call.1} parent=1 // pred_fallthru
      _
    // Predicated region
    $region58: #{tpu_custom_call.1} parent=1 // pred_check
      _
    $region59: #{tpu_custom_call.1} parent=1 // pred_check_branch
      %111 = sbr.rel (0) target = $region61
    $region60: #{tpu_custom_call.1} parent=1 // pred_region
      %112 = dma.done [#allocation10], 1024
    $region61: #{tpu_custom_call.1} parent=1 // pred_fallthru
      _
    // Predicated region
    $region62: #{tpu_custom_call.1} parent=1 // pred_check
      _
    $region63: #{tpu_custom_call.1} parent=1 // pred_check_branch
      %114 = sbr.rel (0) target = $region65
    $region64: #{tpu_custom_call.1} parent=1 // pred_region
      %115 = dma.done [#allocation10], 1024
    $region65: #{tpu_custom_call.1} parent=1 // pred_fallthru
      _
    // Predicated region
    $region66: #{tpu_custom_call.1} parent=1 // pred_check
      _
    $region67: #{tpu_custom_call.1} parent=1 // pred_check_branch
      %117 = sbr.rel (0) target = $region69
    $region68: #{tpu_custom_call.1} parent=1 // pred_region
      %118 = dma.done [#allocation13], 1024
    $region69: #{tpu_custom_call.1} parent=1 // pred_fallthru
      _
    %p120 = scmp.eq.s32.totalorder 0, 0
    // Predicated region
    $region70: #{tpu_custom_call.1} parent=1 // pred_check
      %p121 = pneg %p120
    $region71: #{tpu_custom_call.1} parent=1 // pred_check_branch
      %123 = sbr.rel (%p121) target = $region73
    $region72: #{tpu_custom_call.1} parent=1 // pred_region
      %v124 = vld [vmem:[#allocation3] sm:$0xff]
      %v125 = vld [vmem:[#allocation6] sm:$0xf]
      %v126 = vld [vmem:[#allocation6 + $0x4] sm:$0xf]
      %v127 = vld [vmem:[#allocation6 + $0x8] sm:$0xf]
      %v128 = vld [vmem:[#allocation6 + $0xc] sm:$0xf]
      %v129 = vld [vmem:[#allocation6 + $0x10] sm:$0xf]
      %v130 = vld [vmem:[#allocation6 + $0x14] sm:$0xf]
      %v131 = vld [vmem:[#allocation6 + $0x18] sm:$0xf]
      %v132 = vld [vmem:[#allocation6 + $0x1c] sm:$0xf]
      %v133 = vld [vmem:[#allocation6 + $0x20] sm:$0xf]
      %v134 = vld [vmem:[#allocation6 + $0x24] sm:$0xf]
      %v135 = vld [vmem:[#allocation6 + $0x28] sm:$0xf]
      %v136 = vld [vmem:[#allocation6 + $0x2c] sm:$0xf]
      %v137 = vld [vmem:[#allocation6 + $0x30] sm:$0xf]
      %v138 = vld [vmem:[#allocation6 + $0x34] sm:$0xf]
      %v139 = vld [vmem:[#allocation6 + $0x38] sm:$0xf]
      %v140 = vld [vmem:[#allocation6 + $0x3c] sm:$0xf]
      %v141 = vld [vmem:[%s2] sm:$0x1]
      %v142 = vpack.c.bf16 %v124, %v124
      %v144 = vlaneseq
      %v145 = vshrl.u32 %v144, 7
      %v146 = vsub.s32 0, %v145
      %v147 = vrot.slane %v141, %v146
      %v165 = vunpack.c.l.b16 %v125
      %v166 = vunpack.c.l.b16 %v126
      %v167 = vunpack.c.l.b16 %v127
      %v168 = vunpack.c.l.b16 %v128
      %v169 = vunpack.c.l.b16 %v129
      %v170 = vunpack.c.l.b16 %v130
      %v171 = vunpack.c.l.b16 %v131
      %v172 = vunpack.c.l.b16 %v132
      %v173 = vunpack.c.l.b16 %v133
      %v174 = vunpack.c.l.b16 %v134
      %v175 = vunpack.c.l.b16 %v135
      %v176 = vunpack.c.l.b16 %v136
      %v177 = vunpack.c.l.b16 %v137
      %v178 = vunpack.c.l.b16 %v138
      %v179 = vunpack.c.l.b16 %v139
      %v180 = vunpack.c.l.b16 %v140
      %v181 = vpack.c.b16 %v166, %v165
      %v182 = vpack.c.b16 %v168, %v167
      %v183 = vpack.c.b16 %v170, %v169
      %v184 = vpack.c.b16 %v172, %v171
      %v185 = vpack.c.b16 %v174, %v173
      %v186 = vpack.c.b16 %v176, %v175
      %v187 = vpack.c.b16 %v178, %v177
      %v188 = vpack.c.b16 %v180, %v179
      %197 = vmatprep.subr.bf16.mxu0 0
      %198 = vmatpush1.bf16.msra.mxu0 %v181
      %199 = vmatprep.subr.bf16.mxu0 0
      %200 = vmatpush1.bf16.msra.mxu0 %v182
      %201 = vmatprep.subr.bf16.mxu0 0
      %202 = vmatpush1.bf16.msra.mxu0 %v183
      %203 = vmatprep.subr.bf16.mxu0 0
      %204 = vmatpush1.bf16.msra.mxu0 %v184
      %205 = vmatprep.subr.bf16.mxu0 0
      %206 = vmatpush1.bf16.msra.mxu0 %v185
      %207 = vmatprep.subr.bf16.mxu0 0
      %208 = vmatpush1.bf16.msra.mxu0 %v186
      %209 = vmatprep.subr.bf16.mxu0 0
      %210 = vmatpush1.bf16.msra.mxu0 %v187
      %211 = vmatprep.subr.bf16.mxu0 0
      %212 = vmatpush1.bf16.msra.mxu0 %v188
      %213 = vmatprep.subr.bf16.mxu0 0
      %214 = vmatpush1.bf16.msra.mxu0 0
      %215 = vmatprep.subr.bf16.mxu0 0
      %216 = vmatpush1.bf16.msra.mxu0 0
      %217 = vmatprep.subr.bf16.mxu0 0
      %218 = vmatpush1.bf16.msra.mxu0 0
      %219 = vmatprep.subr.bf16.mxu0 0
      %220 = vmatpush1.bf16.msra.mxu0 0
      %221 = vmatprep.subr.bf16.mxu0 0
      %222 = vmatpush1.bf16.msra.mxu0 0
      %223 = vmatprep.subr.bf16.mxu0 0
      %224 = vmatpush1.bf16.msra.mxu0 0
      %225 = vmatprep.subr.bf16.mxu0 0
      %226 = vmatpush1.bf16.msra.mxu0 0
      %227 = vmatprep.subr.bf16.mxu0 0
      %228 = vmatpush1.bf16.msra.mxu0 0
      %229 = vmatprep.mubr.bf16.mxu0 0
      %230 = vmatmul.mubr.bf16.gmra.mrb[0].mxu0 %v142
      %v231 = vpop.f32.mrb[0].mxu0
      %v232 = vadd.f32 %v147, %v231
      %v233 = vpop.f32.mrb[0].mxu0
      %v234 = vpop.f32.mrb[0].mxu0
      %v235 = vpop.f32.mrb[0].mxu0
      %236 = vdwg.mxu0
      %vm237 = vcmp.ge.f32.partialorder %v232, 0.0
      %v238 = vmul.f32 %v232, 0.1
      %v239 = vsel %vm237, %v232, %v238
      %v240 = vld [vmem:[#allocation8] sm:$0xf]
      %v241 = vld [vmem:[#allocation8 + $0x4] sm:$0xf]
      %v242 = vld [vmem:[#allocation8 + $0x8] sm:$0xf]
      %v243 = vld [vmem:[#allocation8 + $0xc] sm:$0xf]
      %v244 = vld [vmem:[#allocation8 + $0x10] sm:$0xf]
      %v245 = vld [vmem:[#allocation8 + $0x14] sm:$0xf]
      %v246 = vld [vmem:[#allocation8 + $0x18] sm:$0xf]
      %v247 = vld [vmem:[#allocation8 + $0x1c] sm:$0xf]
      %v248 = vld [vmem:[#allocation8 + $0x20] sm:$0xf]
      %v249 = vld [vmem:[#allocation8 + $0x24] sm:$0xf]
      %v250 = vld [vmem:[#allocation8 + $0x28] sm:$0xf]
      %v251 = vld [vmem:[#allocation8 + $0x2c] sm:$0xf]
      %v252 = vld [vmem:[#allocation8 + $0x30] sm:$0xf]
      %v253 = vld [vmem:[#allocation8 + $0x34] sm:$0xf]
      %v254 = vld [vmem:[#allocation8 + $0x38] sm:$0xf]
      %v255 = vld [vmem:[#allocation8 + $0x3c] sm:$0xf]
      %v256 = vld [vmem:[%s4] sm:$0x1]
      %v257 = vpack.c.bf16 %v239, %v239
      %v259 = vlaneseq
      %v260 = vshrl.u32 %v259, 7
      %v261 = vsub.s32 0, %v260
      %v262 = vrot.slane %v256, %v261
      %v280 = vunpack.c.l.b16 %v240
      %v281 = vunpack.c.l.b16 %v241
      %v282 = vunpack.c.l.b16 %v242
      %v283 = vunpack.c.l.b16 %v243
      %v284 = vunpack.c.l.b16 %v244
      %v285 = vunpack.c.l.b16 %v245
      %v286 = vunpack.c.l.b16 %v246
      %v287 = vunpack.c.l.b16 %v247
      %v288 = vunpack.c.l.b16 %v248
      %v289 = vunpack.c.l.b16 %v249
      %v290 = vunpack.c.l.b16 %v250
      %v291 = vunpack.c.l.b16 %v251
      %v292 = vunpack.c.l.b16 %v252
      %v293 = vunpack.c.l.b16 %v253
      %v294 = vunpack.c.l.b16 %v254
      %v295 = vunpack.c.l.b16 %v255
      %v296 = vpack.c.b16 %v281, %v280
      %v297 = vpack.c.b16 %v283, %v282
      %v298 = vpack.c.b16 %v285, %v284
      %v299 = vpack.c.b16 %v287, %v286
      %v300 = vpack.c.b16 %v289, %v288
      %v301 = vpack.c.b16 %v291, %v290
      %v302 = vpack.c.b16 %v293, %v292
      %v303 = vpack.c.b16 %v295, %v294
      %312 = vmatprep.subr.bf16.mxu0 0
      %313 = vmatpush1.bf16.msra.mxu0 %v296
      %314 = vmatprep.subr.bf16.mxu0 0
      %315 = vmatpush1.bf16.msra.mxu0 %v297
      %316 = vmatprep.subr.bf16.mxu0 0
      %317 = vmatpush1.bf16.msra.mxu0 %v298
      %318 = vmatprep.subr.bf16.mxu0 0
      %319 = vmatpush1.bf16.msra.mxu0 %v299
      %320 = vmatprep.subr.bf16.mxu0 0
      %321 = vmatpush1.bf16.msra.mxu0 %v300
      %322 = vmatprep.subr.bf16.mxu0 0
      %323 = vmatpush1.bf16.msra.mxu0 %v301
      %324 = vmatprep.subr.bf16.mxu0 0
      %325 = vmatpush1.bf16.msra.mxu0 %v302
      %326 = vmatprep.subr.bf16.mxu0 0
      %327 = vmatpush1.bf16.msra.mxu0 %v303
      %328 = vmatprep.subr.bf16.mxu0 0
      %329 = vmatpush1.bf16.msra.mxu0 0
      %330 = vmatprep.subr.bf16.mxu0 0
      %331 = vmatpush1.bf16.msra.mxu0 0
      %332 = vmatprep.subr.bf16.mxu0 0
      %333 = vmatpush1.bf16.msra.mxu0 0
      %334 = vmatprep.subr.bf16.mxu0 0
      %335 = vmatpush1.bf16.msra.mxu0 0
      %336 = vmatprep.subr.bf16.mxu0 0
      %337 = vmatpush1.bf16.msra.mxu0 0
      %338 = vmatprep.subr.bf16.mxu0 0
      %339 = vmatpush1.bf16.msra.mxu0 0
      %340 = vmatprep.subr.bf16.mxu0 0
      %341 = vmatpush1.bf16.msra.mxu0 0
      %342 = vmatprep.subr.bf16.mxu0 0
      %343 = vmatpush1.bf16.msra.mxu0 0
      %344 = vmatprep.mubr.bf16.mxu0 0
      %345 = vmatmul.mubr.bf16.gmra.mrb[0].mxu0 %v257
      %v346 = vpop.f32.mrb[0].mxu0
      %v347 = vadd.f32 %v262, %v346
      %v348 = vpop.f32.mrb[0].mxu0
      %v349 = vpop.f32.mrb[0].mxu0
      %v350 = vpop.f32.mrb[0].mxu0
      %351 = vdwg.mxu0
      %vm352 = vcmp.ge.f32.partialorder %v347, 0.0
      %v353 = vmul.f32 %v347, 0.1
      %v354 = vsel %vm352, %v347, %v353
      %v355 = vld [vmem:[#allocation9] sm:$0xf]
      %v356 = vld [vmem:[#allocation9 + $0x4] sm:$0xf]
      %v357 = vld [vmem:[#allocation9 + $0x8] sm:$0xf]
      %v358 = vld [vmem:[#allocation9 + $0xc] sm:$0xf]
      %v359 = vld [vmem:[#allocation9 + $0x10] sm:$0xf]
      %v360 = vld [vmem:[#allocation9 + $0x14] sm:$0xf]
      %v361 = vld [vmem:[#allocation9 + $0x18] sm:$0xf]
      %v362 = vld [vmem:[#allocation9 + $0x1c] sm:$0xf]
      %v363 = vld [vmem:[#allocation9 + $0x20] sm:$0xf]
      %v364 = vld [vmem:[#allocation9 + $0x24] sm:$0xf]
      %v365 = vld [vmem:[#allocation9 + $0x28] sm:$0xf]
      %v366 = vld [vmem:[#allocation9 + $0x2c] sm:$0xf]
      %v367 = vld [vmem:[#allocation9 + $0x30] sm:$0xf]
      %v368 = vld [vmem:[#allocation9 + $0x34] sm:$0xf]
      %v369 = vld [vmem:[#allocation9 + $0x38] sm:$0xf]
      %v370 = vld [vmem:[#allocation9 + $0x3c] sm:$0xf]
      %v371 = vld [vmem:[%s6] sm:$0x1]
      %v372 = vpack.c.bf16 %v354, %v354
      %v374 = vlaneseq
      %v375 = vshrl.u32 %v374, 7
      %v376 = vsub.s32 0, %v375
      %v377 = vrot.slane %v371, %v376
      %v395 = vunpack.c.l.b16 %v355
      %v396 = vunpack.c.l.b16 %v356
      %v397 = vunpack.c.l.b16 %v357
      %v398 = vunpack.c.l.b16 %v358
      %v399 = vunpack.c.l.b16 %v359
      %v400 = vunpack.c.l.b16 %v360
      %v401 = vunpack.c.l.b16 %v361
      %v402 = vunpack.c.l.b16 %v362
      %v403 = vunpack.c.l.b16 %v363
      %v404 = vunpack.c.l.b16 %v364
      %v405 = vunpack.c.l.b16 %v365
      %v406 = vunpack.c.l.b16 %v366
      %v407 = vunpack.c.l.b16 %v367
      %v408 = vunpack.c.l.b16 %v368
      %v409 = vunpack.c.l.b16 %v369
      %v410 = vunpack.c.l.b16 %v370
      %v411 = vpack.c.b16 %v396, %v395
      %v412 = vpack.c.b16 %v398, %v397
      %v413 = vpack.c.b16 %v400, %v399
      %v414 = vpack.c.b16 %v402, %v401
      %v415 = vpack.c.b16 %v404, %v403
      %v416 = vpack.c.b16 %v406, %v405
      %v417 = vpack.c.b16 %v408, %v407
      %v418 = vpack.c.b16 %v410, %v409
      %427 = vmatprep.subr.bf16.mxu0 0
      %428 = vmatpush1.bf16.msra.mxu0 %v411
      %429 = vmatprep.subr.bf16.mxu0 0
      %430 = vmatpush1.bf16.msra.mxu0 %v412
      %431 = vmatprep.subr.bf16.mxu0 0
      %432 = vmatpush1.bf16.msra.mxu0 %v413
      %433 = vmatprep.subr.bf16.mxu0 0
      %434 = vmatpush1.bf16.msra.mxu0 %v414
      %435 = vmatprep.subr.bf16.mxu0 0
      %436 = vmatpush1.bf16.msra.mxu0 %v415
      %437 = vmatprep.subr.bf16.mxu0 0
      %438 = vmatpush1.bf16.msra.mxu0 %v416
      %439 = vmatprep.subr.bf16.mxu0 0
      %440 = vmatpush1.bf16.msra.mxu0 %v417
      %441 = vmatprep.subr.bf16.mxu0 0
      %442 = vmatpush1.bf16.msra.mxu0 %v418
      %443 = vmatprep.subr.bf16.mxu0 0
      %444 = vmatpush1.bf16.msra.mxu0 0
      %445 = vmatprep.subr.bf16.mxu0 0
      %446 = vmatpush1.bf16.msra.mxu0 0
      %447 = vmatprep.subr.bf16.mxu0 0
      %448 = vmatpush1.bf16.msra.mxu0 0
      %449 = vmatprep.subr.bf16.mxu0 0
      %450 = vmatpush1.bf16.msra.mxu0 0
      %451 = vmatprep.subr.bf16.mxu0 0
      %452 = vmatpush1.bf16.msra.mxu0 0
      %453 = vmatprep.subr.bf16.mxu0 0
      %454 = vmatpush1.bf16.msra.mxu0 0
      %455 = vmatprep.subr.bf16.mxu0 0
      %456 = vmatpush1.bf16.msra.mxu0 0
      %457 = vmatprep.subr.bf16.mxu0 0
      %458 = vmatpush1.bf16.msra.mxu0 0
      %459 = vmatprep.mubr.bf16.mxu0 0
      %460 = vmatmul.mubr.bf16.gmra.mrb[0].mxu0 %v372
      %v461 = vpop.f32.mrb[0].mxu0
      %v462 = vadd.f32 %v377, %v461
      %v463 = vpop.f32.mrb[0].mxu0
      %v464 = vpop.f32.mrb[0].mxu0
      %v465 = vpop.f32.mrb[0].mxu0
      %466 = vdwg.mxu0
      %vm467 = vcmp.ge.f32.partialorder %v462, 0.0
      %v468 = vmul.f32 %v462, 0.1
      %v469 = vsel %vm467, %v462, %v468
      %v470 = vld [vmem:[#allocation11] sm:$0xf]
      %v471 = vld [vmem:[#allocation11 + $0x4] sm:$0xf]
      %v472 = vld [vmem:[#allocation11 + $0x8] sm:$0xf]
      %v473 = vld [vmem:[#allocation11 + $0xc] sm:$0xf]
      %v474 = vld [vmem:[#allocation11 + $0x10] sm:$0xf]
      %v475 = vld [vmem:[#allocation11 + $0x14] sm:$0xf]
      %v476 = vld [vmem:[#allocation11 + $0x18] sm:$0xf]
      %v477 = vld [vmem:[#allocation11 + $0x1c] sm:$0xf]
      %v478 = vld [vmem:[#allocation11 + $0x20] sm:$0xf]
      %v479 = vld [vmem:[#allocation11 + $0x24] sm:$0xf]
      %v480 = vld [vmem:[#allocation11 + $0x28] sm:$0xf]
      %v481 = vld [vmem:[#allocation11 + $0x2c] sm:$0xf]
      %v482 = vld [vmem:[#allocation11 + $0x30] sm:$0xf]
      %v483 = vld [vmem:[#allocation11 + $0x34] sm:$0xf]
      %v484 = vld [vmem:[#allocation11 + $0x38] sm:$0xf]
      %v485 = vld [vmem:[#allocation11 + $0x3c] sm:$0xf]
      %v486 = vld [vmem:[%s8] sm:$0x1]
      %v487 = vpack.c.bf16 %v469, %v469
      %v489 = vlaneseq
      %v490 = vshrl.u32 %v489, 7
      %v491 = vsub.s32 0, %v490
      %v492 = vrot.slane %v486, %v491
      %v510 = vunpack.c.l.b16 %v470
      %v511 = vunpack.c.l.b16 %v471
      %v512 = vunpack.c.l.b16 %v472
      %v513 = vunpack.c.l.b16 %v473
      %v514 = vunpack.c.l.b16 %v474
      %v515 = vunpack.c.l.b16 %v475
      %v516 = vunpack.c.l.b16 %v476
      %v517 = vunpack.c.l.b16 %v477
      %v518 = vunpack.c.l.b16 %v478
      %v519 = vunpack.c.l.b16 %v479
      %v520 = vunpack.c.l.b16 %v480
      %v521 = vunpack.c.l.b16 %v481
      %v522 = vunpack.c.l.b16 %v482
      %v523 = vunpack.c.l.b16 %v483
      %v524 = vunpack.c.l.b16 %v484
      %v525 = vunpack.c.l.b16 %v485
      %v526 = vpack.c.b16 %v511, %v510
      %v527 = vpack.c.b16 %v513, %v512
      %v528 = vpack.c.b16 %v515, %v514
      %v529 = vpack.c.b16 %v517, %v516
      %v530 = vpack.c.b16 %v519, %v518
      %v531 = vpack.c.b16 %v521, %v520
      %v532 = vpack.c.b16 %v523, %v522
      %v533 = vpack.c.b16 %v525, %v524
      %542 = vmatprep.subr.bf16.mxu0 0
      %543 = vmatpush1.bf16.msra.mxu0 %v526
      %544 = vmatprep.subr.bf16.mxu0 0
      %545 = vmatpush1.bf16.msra.mxu0 %v527
      %546 = vmatprep.subr.bf16.mxu0 0
      %547 = vmatpush1.bf16.msra.mxu0 %v528
      %548 = vmatprep.subr.bf16.mxu0 0
      %549 = vmatpush1.bf16.msra.mxu0 %v529
      %550 = vmatprep.subr.bf16.mxu0 0
      %551 = vmatpush1.bf16.msra.mxu0 %v530
      %552 = vmatprep.subr.bf16.mxu0 0
      %553 = vmatpush1.bf16.msra.mxu0 %v531
      %554 = vmatprep.subr.bf16.mxu0 0
      %555 = vmatpush1.bf16.msra.mxu0 %v532
      %556 = vmatprep.subr.bf16.mxu0 0
      %557 = vmatpush1.bf16.msra.mxu0 %v533
      %558 = vmatprep.subr.bf16.mxu0 0
      %559 = vmatpush1.bf16.msra.mxu0 0
      %560 = vmatprep.subr.bf16.mxu0 0
      %561 = vmatpush1.bf16.msra.mxu0 0
      %562 = vmatprep.subr.bf16.mxu0 0
      %563 = vmatpush1.bf16.msra.mxu0 0
      %564 = vmatprep.subr.bf16.mxu0 0
      %565 = vmatpush1.bf16.msra.mxu0 0
      %566 = vmatprep.subr.bf16.mxu0 0
      %567 = vmatpush1.bf16.msra.mxu0 0
      %568 = vmatprep.subr.bf16.mxu0 0
      %569 = vmatpush1.bf16.msra.mxu0 0
      %570 = vmatprep.subr.bf16.mxu0 0
      %571 = vmatpush1.bf16.msra.mxu0 0
      %572 = vmatprep.subr.bf16.mxu0 0
      %573 = vmatpush1.bf16.msra.mxu0 0
      %574 = vmatprep.mubr.bf16.mxu0 0
      %575 = vmatmul.mubr.bf16.gmra.mrb[0].mxu0 %v487
      %v576 = vpop.f32.mrb[0].mxu0
      %v577 = vadd.f32 %v492, %v576
      %v578 = vpop.f32.mrb[0].mxu0
      %v579 = vpop.f32.mrb[0].mxu0
      %v580 = vpop.f32.mrb[0].mxu0
      %581 = vdwg.mxu0
      %v582 = vtanh.pop %v577
      %583 = vst [vmem:[#allocation2] sm:$0xff] %v582
    $region73: #{tpu_custom_call.1} parent=1 // pred_fallthru
      _
    %v584 = vld [vmem:[#allocation12] sm:$0xf]
    %v585 = vld [vmem:[#allocation12 + $0x4] sm:$0xf]
    %v586 = vld [vmem:[#allocation12 + $0x8] sm:$0xf]
    %v587 = vld [vmem:[#allocation12 + $0xc] sm:$0xf]
    %v588 = vld [vmem:[#allocation12 + $0x10] sm:$0xf]
    %v589 = vld [vmem:[#allocation12 + $0x14] sm:$0xf]
    %v590 = vld [vmem:[#allocation12 + $0x18] sm:$0xf]
    %v591 = vld [vmem:[#allocation12 + $0x1c] sm:$0xf]
    %v592 = vld [vmem:[#allocation12 + $0x20] sm:$0xf]
    %v593 = vld [vmem:[#allocation12 + $0x24] sm:$0xf]
    %v594 = vld [vmem:[#allocation12 + $0x28] sm:$0xf]
    %v595 = vld [vmem:[#allocation12 + $0x2c] sm:$0xf]
    %v596 = vld [vmem:[#allocation12 + $0x30] sm:$0xf]
    %v597 = vld [vmem:[#allocation12 + $0x34] sm:$0xf]
    %v598 = vld [vmem:[#allocation12 + $0x38] sm:$0xf]
    %v599 = vld [vmem:[#allocation12 + $0x3c] sm:$0xf]
    %v600 = vld [vmem:[%s10] sm:$0x1]
    %v601 = vld [vmem:[#allocation2] sm:$0xff]
    %v602 = vpack.c.bf16 %v601, %v601
    %v604 = vlaneseq
    %v605 = vshrl.u32 %v604, 7
    %v606 = vsub.s32 0, %v605
    %v607 = vrot.slane %v600, %v606
    %v625 = vunpack.c.l.b16 %v584
    %v626 = vunpack.c.l.b16 %v585
    %v627 = vunpack.c.l.b16 %v586
    %v628 = vunpack.c.l.b16 %v587
    %v629 = vunpack.c.l.b16 %v588
    %v630 = vunpack.c.l.b16 %v589
    %v631 = vunpack.c.l.b16 %v590
    %v632 = vunpack.c.l.b16 %v591
    %v633 = vunpack.c.l.b16 %v592
    %v634 = vunpack.c.l.b16 %v593
    %v635 = vunpack.c.l.b16 %v594
    %v636 = vunpack.c.l.b16 %v595
    %v637 = vunpack.c.l.b16 %v596
    %v638 = vunpack.c.l.b16 %v597
    %v639 = vunpack.c.l.b16 %v598
    %v640 = vunpack.c.l.b16 %v599
    %v641 = vpack.c.b16 %v626, %v625
    %v642 = vpack.c.b16 %v628, %v627
    %v643 = vpack.c.b16 %v630, %v629
    %v644 = vpack.c.b16 %v632, %v631
    %v645 = vpack.c.b16 %v634, %v633
    %v646 = vpack.c.b16 %v636, %v635
    %v647 = vpack.c.b16 %v638, %v637
    %v648 = vpack.c.b16 %v640, %v639
    %657 = vmatprep.subr.bf16.mxu0 0
    %658 = vmatpush1.bf16.msra.mxu0 %v641
    %659 = vmatprep.subr.bf16.mxu0 0
    %660 = vmatpush1.bf16.msra.mxu0 %v642
    %661 = vmatprep.subr.bf16.mxu0 0
    %662 = vmatpush1.bf16.msra.mxu0 %v643
    %663 = vmatprep.subr.bf16.mxu0 0
    %664 = vmatpush1.bf16.msra.mxu0 %v644
    %665 = vmatprep.subr.bf16.mxu0 0
    %666 = vmatpush1.bf16.msra.mxu0 %v645
    %667 = vmatprep.subr.bf16.mxu0 0
    %668 = vmatpush1.bf16.msra.mxu0 %v646
    %669 = vmatprep.subr.bf16.mxu0 0
    %670 = vmatpush1.bf16.msra.mxu0 %v647
    %671 = vmatprep.subr.bf16.mxu0 0
    %672 = vmatpush1.bf16.msra.mxu0 %v648
    %673 = vmatprep.subr.bf16.mxu0 0
    %674 = vmatpush1.bf16.msra.mxu0 0
    %675 = vmatprep.subr.bf16.mxu0 0
    %676 = vmatpush1.bf16.msra.mxu0 0
    %677 = vmatprep.subr.bf16.mxu0 0
    %678 = vmatpush1.bf16.msra.mxu0 0
    %679 = vmatprep.subr.bf16.mxu0 0
    %680 = vmatpush1.bf16.msra.mxu0 0
    %681 = vmatprep.subr.bf16.mxu0 0
    %682 = vmatpush1.bf16.msra.mxu0 0
    %683 = vmatprep.subr.bf16.mxu0 0
    %684 = vmatpush1.bf16.msra.mxu0 0
    %685 = vmatprep.subr.bf16.mxu0 0
    %686 = vmatpush1.bf16.msra.mxu0 0
    %687 = vmatprep.subr.bf16.mxu0 0
    %688 = vmatpush1.bf16.msra.mxu0 0
    %689 = vmatprep.mubr.bf16.mxu0 0
    %690 = vmatmul.mubr.bf16.gmra.mrb[0].mxu0 %v602
    %v691 = vpop.f32.mrb[0].mxu0
    %v692 = vadd.f32 %v607, %v691
    %v693 = vpop.f32.mrb[0].mxu0
    %v694 = vpop.f32.mrb[0].mxu0
    %v695 = vpop.f32.mrb[0].mxu0
    %696 = vdwg.mxu0
    %697 = vst [vmem:[#allocation14] sm:$0xff] %v692
    // Predicated region
    $region74: #{tpu_custom_call.1} parent=1 // pred_check
      _
    $region75: #{tpu_custom_call.1} parent=1 // pred_check_branch
      %699 = sbr.rel (0) target = $region77
    $region76: #{tpu_custom_call.1} parent=1 // pred_region
      %s701 = ssub.s32 128, 128
      %702 = vsyncadd [#allocation5], %s701
      %s704 = sshll.u32 [#allocation14], 4
      %s705 = int_to_ptr.vmem [resolvable:$true] %s704
      %707 = dma.vmem_to_hbm [thread:$0]  %s705, 128, %s11, [#allocation5]
    $region77: #{tpu_custom_call.1} parent=1 // pred_fallthru
      _
    // Predicated region
    $region78: #{tpu_custom_call.1} parent=1 // pred_check
      _
    $region79: #{tpu_custom_call.1} parent=1 // pred_check_branch
      %709 = sbr.rel (0) target = $region81
    $region80: #{tpu_custom_call.1} parent=1 // pred_region
      %710 = dma.done [#allocation5], 128
    $region81: #{tpu_custom_call.1} parent=1 // pred_fallthru
      _
    %711 = vsyncpa [#allocation4], 1
    %712 = vsyncpa [#allocation7], 1
    %713 = vsyncpa [#allocation10], 1
    %714 = vsyncpa [#allocation13], 1
    %715 = vsyncpa [#allocation5], 1

// kernel: tpu_custom_call.1
$region0: #{tpu_custom_call.1}
  #allocation0 [shape = 'u32[]', space=smem, size = 0x4, offset = 0x4, fixed_abs, tag = 'smem constant byte address 0x4 - core index']
  #allocation1 [shape = 'u32[144,128]{1,0:T(1,128)}', space=vmem, size = 0x12000, scoped, tag = 'internal scratch']
  #allocation2 [shape = 'f32[8,128]{1,0:T(8,128)}', space=vmem, size = 0x1000, scoped, tag = 'scratch operand']
  %s0 = inlined_call_operand.hbm [shape: f32[8,128], index: 0, kind: input, shape index: {}]
  %s1 = inlined_call_operand.hbm [shape: bf16[128,128], index: 1, kind: input, shape index: {}]
  %s2 = inlined_call_operand.vmem [shape: f32[1,128], index: 2, kind: input, shape index: {}]
  %s3 = inlined_call_operand.hbm [shape: bf16[128,128], index: 3, kind: input, shape index: {}]
  %s4 = inlined_call_operand.vmem [shape: f32[1,128], index: 4, kind: input, shape index: {}]
  %s5 = inlined_call_operand.hbm [shape: bf16[128,128], index: 5, kind: input, shape index: {}]
  %s6 = inlined_call_operand.vmem [shape: f32[1,128], index: 6, kind: input, shape index: {}]
  %s7 = inlined_call_operand.hbm [shape: bf16[128,128], index: 7, kind: input, shape index: {}]
  %s8 = inlined_call_operand.vmem [shape: f32[1,128], index: 8, kind: input, shape index: {}]
  %s9 = inlined_call_operand.hbm [shape: bf16[128,128], index: 9, kind: input, shape index: {}]
  %s10 = inlined_call_operand.vmem [shape: f32[1,128], index: 10, kind: input, shape index: {}]
  %s11 = inlined_call_operand.hbm [shape: f32[8,128], index: 11, kind: output, shape index: {}]
  %s12 = sld [smem:[#allocation0]]
  $region82: #{tpu_custom_call.1} parent=0
    _
  %s14 = ssub.s32 1, %s12
  %s15 = scalar_select 0, %s14, %s12
  $region1: #{tpu_custom_call.1} parent=0
    #allocation3 [shape = 'u8[4096]{0}', space=vmem, size = 0x1000, scoped, tag = 'input window, operand 0, single buffered']
    #allocation4 [shape = 's32[1]{0}', space=sflag, size = 0x4, scoped, tag = 'scoped memory for tpu_custom_call.1']
    #allocation5 [shape = 's32[1]{0}', space=sflag, size = 0x4, scoped, tag = 'scoped memory for tpu_custom_call.1']
    #allocation6 [shape = 'u8[32768]{0}', space=vmem, size = 0x8000, scoped, tag = 'input window, operand 1, single buffered']
    #allocation7 [shape = 's32[1]{0}', space=sflag, size = 0x4, scoped, tag = 'scoped memory for tpu_custom_call.1']
    #allocation8 [shape = 'u8[32768]{0}', space=vmem, size = 0x8000, scoped, tag = 'input window, operand 3, single buffered']
    #allocation9 [shape = 'u8[32768]{0}', space=vmem, size = 0x8000, scoped, tag = 'input window, operand 5, single buffered']
    #allocation10 [shape = 's32[1]{0}', space=sflag, size = 0x4, scoped, tag = 'scoped memory for tpu_custom_call.1']
    #allocation11 [shape = 'u8[32768]{0}', space=vmem, size = 0x8000, scoped, tag = 'input window, operand 7, single buffered']
    #allocation12 [shape = 'u8[32768]{0}', space=vmem, size = 0x8000, scoped, tag = 'input window, operand 9, single buffered']
    #allocation13 [shape = 's32[1]{0}', space=sflag, size = 0x4, scoped, tag = 'scoped memory for tpu_custom_call.1']
    #allocation14 [shape = 'u8[4096]{0}', space=vmem, size = 0x1000, scoped, tag = 'output window, operand 0, single buffered']
    %16 = vsyncpa [#allocation4], 0
    %17 = vsyncpa [#allocation7], 0
    %18 = vsyncpa [#allocation10], 0
    %19 = vsyncpa [#allocation13], 0
    %20 = vsyncpa [#allocation5], 0
    // Predicated region
    $region2: #{tpu_custom_call.1} parent=1 // pred_check
      _
    $region3: #{tpu_custom_call.1} parent=1 // pred_check_branch
      %22 = sbr.rel (0) target = $region5
    $region4: #{tpu_custom_call.1} parent=1 // pred_region
      %s24 = ssub.s32 128, 128
      %25 = vsyncadd [#allocation4], %s24
      %s27 = sshll.u32 [#allocation3], 4
      %s28 = int_to_ptr.vmem [resolvable:$true] %s27
      %30 = dma.hbm_to_vmem [thread:$0]  %s0, 128, %s28, [#allocation4]
    $region5: #{tpu_custom_call.1} parent=1 // pred_fallthru
      _
    // Predicated region
    $region6: #{tpu_custom_call.1} parent=1 // pred_check
      _
    $region7: #{tpu_custom_call.1} parent=1 // pred_check_branch
      %32 = sbr.rel (0) target = $region9
    $region8: #{tpu_custom_call.1} parent=1 // pred_region
      %s34 = ssub.s32 1024, 1024
      %35 = vsyncadd [#allocation7], %s34
      %s36 = sshll.u32 [#allocation6], 4
      %s37 = int_to_ptr.vmem [resolvable:$true] %s36
      %42 = dma.hbm_to_vmem [thread:$0]  %s1, 1024, %s37, [#allocation7], 64, 64, 4
    $region9: #{tpu_custom_call.1} parent=1 // pred_fallthru
      _
    // Predicated region
    $region10: #{tpu_custom_call.1} parent=1 // pred_check
      _
    $region11: #{tpu_custom_call.1} parent=1 // pred_check_branch
      %44 = sbr.rel (0) target = $region13
    $region12: #{tpu_custom_call.1} parent=1 // pred_region
      _
    $region13: #{tpu_custom_call.1} parent=1 // pred_fallthru
      _
    // Predicated region
    $region14: #{tpu_custom_call.1} parent=1 // pred_check
      _
    $region15: #{tpu_custom_call.1} parent=1 // pred_check_branch
      %46 = sbr.rel (0) target = $region17
    $region16: #{tpu_custom_call.1} parent=1 // pred_region
      %s48 = ssub.s32 1024, 1024
      %49 = vsyncadd [#allocation7], %s48
      %s50 = sshll.u32 [#allocation8], 4
      %s51 = int_to_ptr.vmem [resolvable:$true] %s50
      %56 = dma.hbm_to_vmem [thread:$0]  %s3, 1024, %s51, [#allocation7], 64, 64, 4
    $region17: #{tpu_custom_call.1} parent=1 // pred_fallthru
      _
    // Predicated region
    $region18: #{tpu_custom_call.1} parent=1 // pred_check
      _
    $region19: #{tpu_custom_call.1} parent=1 // pred_check_branch
      %58 = sbr.rel (0) target = $region21
    $region20: #{tpu_custom_call.1} parent=1 // pred_region
      _
    $region21: #{tpu_custom_call.1} parent=1 // pred_fallthru
      _
    // Predicated region
    $region22: #{tpu_custom_call.1} parent=1 // pred_check
      _
    $region23: #{tpu_custom_call.1} parent=1 // pred_check_branch
      %60 = sbr.rel (0) target = $region25
    $region24: #{tpu_custom_call.1} parent=1 // pred_region
      %s62 = ssub.s32 1024, 1024
      %63 = vsyncadd [#allocation10], %s62
      %s64 = sshll.u32 [#allocation9], 4
      %s65 = int_to_ptr.vmem [resolvable:$true] %s64
      %70 = dma.hbm_to_vmem [thread:$0]  %s5, 1024, %s65, [#allocation10], 64, 64, 4
    $region25: #{tpu_custom_call.1} parent=1 // pred_fallthru
      _
    // Predicated region
    $region26: #{tpu_custom_call.1} parent=1 // pred_check
      _
    $region27: #{tpu_custom_call.1} parent=1 // pred_check_branch
      %72 = sbr.rel (0) target = $region29
    $region28: #{tpu_custom_call.1} parent=1 // pred_region
      _
    $region29: #{tpu_custom_call.1} parent=1 // pred_fallthru
      _
    // Predicated region
    $region30: #{tpu_custom_call.1} parent=1 // pred_check
      _
    $region31: #{tpu_custom_call.1} parent=1 // pred_check_branch
      %74 = sbr.rel (0) target = $region33
    $region32: #{tpu_custom_call.1} parent=1 // pred_region
      %s76 = ssub.s32 1024, 1024
      %77 = vsyncadd [#allocation10], %s76
      %s78 = sshll.u32 [#allocation11], 4
      %s79 = int_to_ptr.vmem [resolvable:$true] %s78
      %84 = dma.hbm_to_vmem [thread:$0]  %s7, 1024, %s79, [#allocation10], 64, 64, 4
    $region33: #{tpu_custom_call.1} parent=1 // pred_fallthru
      _
    // Predicated region
    $region34: #{tpu_custom_call.1} parent=1 // pred_check
      _
    $region35: #{tpu_custom_call.1} parent=1 // pred_check_branch
      %86 = sbr.rel (0) target = $region37
    $region36: #{tpu_custom_call.1} parent=1 // pred_region
      _
    $region37: #{tpu_custom_call.1} parent=1 // pred_fallthru
      _
    // Predicated region
    $region38: #{tpu_custom_call.1} parent=1 // pred_check
      _
    $region39: #{tpu_custom_call.1} parent=1 // pred_check_branch
      %88 = sbr.rel (0) target = $region41
    $region40: #{tpu_custom_call.1} parent=1 // pred_region
      %s90 = ssub.s32 1024, 1024
      %91 = vsyncadd [#allocation13], %s90
      %s92 = sshll.u32 [#allocation12], 4
      %s93 = int_to_ptr.vmem [resolvable:$true] %s92
      %98 = dma.hbm_to_vmem [thread:$0]  %s9, 1024, %s93, [#allocation13], 64, 64, 4
    $region41: #{tpu_custom_call.1} parent=1 // pred_fallthru
      _
    // Predicated region
    $region42: #{tpu_custom_call.1} parent=1 // pred_check
      _
    $region43: #{tpu_custom_call.1} parent=1 // pred_check_branch
      %100 = sbr.rel (0) target = $region45
    $region44: #{tpu_custom_call.1} parent=1 // pred_region
      _
    $region45: #{tpu_custom_call.1} parent=1 // pred_fallthru
      _
    // Predicated region
    $region46: #{tpu_custom_call.1} parent=1 // pred_check
      _
    $region47: #{tpu_custom_call.1} parent=1 // pred_check_branch
      %102 = sbr.rel (0) target = $region49
    $region48: #{tpu_custom_call.1} parent=1 // pred_region
      %103 = dma.done [#allocation4], 128
    $region49: #{tpu_custom_call.1} parent=1 // pred_fallthru
      _
    // Predicated region
    $region50: #{tpu_custom_call.1} parent=1 // pred_check
      _
    $region51: #{tpu_custom_call.1} parent=1 // pred_check_branch
      %105 = sbr.rel (0) target = $region53
    $region52: #{tpu_custom_call.1} parent=1 // pred_region
      %106 = dma.done [#allocation7], 1024
    $region53: #{tpu_custom_call.1} parent=1 // pred_fallthru
      _
    // Predicated region
    $region54: #{tpu_custom_call.1} parent=1 // pred_check
      _
    $region55: #{tpu_custom_call.1} parent=1 // pred_check_branch
      %108 = sbr.rel (0) target = $region57
    $region56: #{tpu_custom_call.1} parent=1 // pred_region
      %109 = dma.done [#allocation7], 1024
    $region57: #{tpu_custom_call.1} parent=1 // pred_fallthru
      _
    // Predicated region
    $region58: #{tpu_custom_call.1} parent=1 // pred_check
      _
    $region59: #{tpu_custom_call.1} parent=1 // pred_check_branch
      %111 = sbr.rel (0) target = $region61
    $region60: #{tpu_custom_call.1} parent=1 // pred_region
      %112 = dma.done [#allocation10], 1024
    $region61: #{tpu_custom_call.1} parent=1 // pred_fallthru
      _
    // Predicated region
    $region62: #{tpu_custom_call.1} parent=1 // pred_check
      _
    $region63: #{tpu_custom_call.1} parent=1 // pred_check_branch
      %114 = sbr.rel (0) target = $region65
    $region64: #{tpu_custom_call.1} parent=1 // pred_region
      %115 = dma.done [#allocation10], 1024
    $region65: #{tpu_custom_call.1} parent=1 // pred_fallthru
      _
    // Predicated region
    $region66: #{tpu_custom_call.1} parent=1 // pred_check
      _
    $region67: #{tpu_custom_call.1} parent=1 // pred_check_branch
      %117 = sbr.rel (0) target = $region69
    $region68: #{tpu_custom_call.1} parent=1 // pred_region
      %118 = dma.done [#allocation13], 1024
    $region69: #{tpu_custom_call.1} parent=1 // pred_fallthru
      _
    %p120 = scmp.eq.s32.totalorder 0, 0
    // Predicated region
    $region70: #{tpu_custom_call.1} parent=1 // pred_check
      %p121 = pneg %p120
    $region71: #{tpu_custom_call.1} parent=1 // pred_check_branch
      %123 = sbr.rel (%p121) target = $region73
    $region72: #{tpu_custom_call.1} parent=1 // pred_region
      %v124 = vld [vmem:[#allocation3] sm:$0xff]
      %v125 = vld [vmem:[#allocation6] sm:$0xf]
      %v126 = vld [vmem:[#allocation6 + $0x4] sm:$0xf]
      %v127 = vld [vmem:[#allocation6 + $0x8] sm:$0xf]
      %v128 = vld [vmem:[#allocation6 + $0xc] sm:$0xf]
      %v129 = vld [vmem:[#allocation6 + $0x10] sm:$0xf]
      %v130 = vld [vmem:[#allocation6 + $0x14] sm:$0xf]
      %v131 = vld [vmem:[#allocation6 + $0x18] sm:$0xf]
      %v132 = vld [vmem:[#allocation6 + $0x1c] sm:$0xf]
      %v133 = vld [vmem:[#allocation6 + $0x20] sm:$0xf]
      %v134 = vld [vmem:[#allocation6 + $0x24] sm:$0xf]
      %v135 = vld [vmem:[#allocation6 + $0x28] sm:$0xf]
      %v136 = vld [vmem:[#allocation6 + $0x2c] sm:$0xf]
      %v137 = vld [vmem:[#allocation6 + $0x30] sm:$0xf]
      %v138 = vld [vmem:[#allocation6 + $0x34] sm:$0xf]
      %v139 = vld [vmem:[#allocation6 + $0x38] sm:$0xf]
      %v140 = vld [vmem:[#allocation6 + $0x3c] sm:$0xf]
      %v141 = vld [vmem:[%s2] sm:$0x1]
      %v142 = vpack.c.bf16 %v124, %v124
      %v144 = vlaneseq
      %v145 = vshrl.u32 %v144, 7
      %v146 = vsub.s32 0, %v145
      %v147 = vrot.slane %v141, %v146
      %v165 = vunpack.c.l.b16 %v125
      %v166 = vunpack.c.l.b16 %v126
      %v167 = vunpack.c.l.b16 %v127
      %v168 = vunpack.c.l.b16 %v128
      %v169 = vunpack.c.l.b16 %v129
      %v170 = vunpack.c.l.b16 %v130
      %v171 = vunpack.c.l.b16 %v131
      %v172 = vunpack.c.l.b16 %v132
      %v173 = vunpack.c.l.b16 %v133
      %v174 = vunpack.c.l.b16 %v134
      %v175 = vunpack.c.l.b16 %v135
      %v176 = vunpack.c.l.b16 %v136
      %v177 = vunpack.c.l.b16 %v137
      %v178 = vunpack.c.l.b16 %v138
      %v179 = vunpack.c.l.b16 %v139
      %v180 = vunpack.c.l.b16 %v140
      %v181 = vpack.c.b16 %v166, %v165
      %v182 = vpack.c.b16 %v168, %v167
      %v183 = vpack.c.b16 %v170, %v169
      %v184 = vpack.c.b16 %v172, %v171
      %v185 = vpack.c.b16 %v174, %v173
      %v186 = vpack.c.b16 %v176, %v175
      %v187 = vpack.c.b16 %v178, %v177
      %v188 = vpack.c.b16 %v180, %v179
      %197 = vmatprep.subr.bf16.mxu0 0
      %198 = vmatpush1.bf16.msra.mxu0 %v181
      %199 = vmatprep.subr.bf16.mxu0 0
      %200 = vmatpush1.bf16.msra.mxu0 %v182
      %201 = vmatprep.subr.bf16.mxu0 0
      %202 = vmatpush1.bf16.msra.mxu0 %v183
      %203 = vmatprep.subr.bf16.mxu0 0
      %204 = vmatpush1.bf16.msra.mxu0 %v184
      %205 = vmatprep.subr.bf16.mxu0 0
      %206 = vmatpush1.bf16.msra.mxu0 %v185
      %207 = vmatprep.subr.bf16.mxu0 0
      %208 = vmatpush1.bf16.msra.mxu0 %v186
      %209 = vmatprep.subr.bf16.mxu0 0
      %210 = vmatpush1.bf16.msra.mxu0 %v187
      %211 = vmatprep.subr.bf16.mxu0 0
      %212 = vmatpush1.bf16.msra.mxu0 %v188
      %213 = vmatprep.subr.bf16.mxu0 0
      %214 = vmatpush1.bf16.msra.mxu0 0
      %215 = vmatprep.subr.bf16.mxu0 0
      %216 = vmatpush1.bf16.msra.mxu0 0
      %217 = vmatprep.subr.bf16.mxu0 0
      %218 = vmatpush1.bf16.msra.mxu0 0
      %219 = vmatprep.subr.bf16.mxu0 0
      %220 = vmatpush1.bf16.msra.mxu0 0
      %221 = vmatprep.subr.bf16.mxu0 0
      %222 = vmatpush1.bf16.msra.mxu0 0
      %223 = vmatprep.subr.bf16.mxu0 0
      %224 = vmatpush1.bf16.msra.mxu0 0
      %225 = vmatprep.subr.bf16.mxu0 0
      %226 = vmatpush1.bf16.msra.mxu0 0
      %227 = vmatprep.subr.bf16.mxu0 0
      %228 = vmatpush1.bf16.msra.mxu0 0
      %229 = vmatprep.mubr.bf16.mxu0 0
      %230 = vmatmul.mubr.bf16.gmra.mrb[0].mxu0 %v142
      %v231 = vpop.f32.mrb[0].mxu0
      %v232 = vadd.f32 %v147, %v231
      %v233 = vpop.f32.mrb[0].mxu0
      %v234 = vpop.f32.mrb[0].mxu0
      %v235 = vpop.f32.mrb[0].mxu0
      %236 = vdwg.mxu0
      %vm237 = vcmp.ge.f32.partialorder %v232, 0.0
      %v238 = vmul.f32 %v232, 0.1
      %v239 = vsel %vm237, %v232, %v238
      %v240 = vld [vmem:[#allocation8] sm:$0xf]
      %v241 = vld [vmem:[#allocation8 + $0x4] sm:$0xf]
      %v242 = vld [vmem:[#allocation8 + $0x8] sm:$0xf]
      %v243 = vld [vmem:[#allocation8 + $0xc] sm:$0xf]
      %v244 = vld [vmem:[#allocation8 + $0x10] sm:$0xf]
      %v245 = vld [vmem:[#allocation8 + $0x14] sm:$0xf]
      %v246 = vld [vmem:[#allocation8 + $0x18] sm:$0xf]
      %v247 = vld [vmem:[#allocation8 + $0x1c] sm:$0xf]
      %v248 = vld [vmem:[#allocation8 + $0x20] sm:$0xf]
      %v249 = vld [vmem:[#allocation8 + $0x24] sm:$0xf]
      %v250 = vld [vmem:[#allocation8 + $0x28] sm:$0xf]
      %v251 = vld [vmem:[#allocation8 + $0x2c] sm:$0xf]
      %v252 = vld [vmem:[#allocation8 + $0x30] sm:$0xf]
      %v253 = vld [vmem:[#allocation8 + $0x34] sm:$0xf]
      %v254 = vld [vmem:[#allocation8 + $0x38] sm:$0xf]
      %v255 = vld [vmem:[#allocation8 + $0x3c] sm:$0xf]
      %v256 = vld [vmem:[%s4] sm:$0x1]
      %v257 = vpack.c.bf16 %v239, %v239
      %v259 = vlaneseq
      %v260 = vshrl.u32 %v259, 7
      %v261 = vsub.s32 0, %v260
      %v262 = vrot.slane %v256, %v261
      %v280 = vunpack.c.l.b16 %v240
      %v281 = vunpack.c.l.b16 %v241
      %v282 = vunpack.c.l.b16 %v242
      %v283 = vunpack.c.l.b16 %v243
      %v284 = vunpack.c.l.b16 %v244
      %v285 = vunpack.c.l.b16 %v245
      %v286 = vunpack.c.l.b16 %v246
      %v287 = vunpack.c.l.b16 %v247
      %v288 = vunpack.c.l.b16 %v248
      %v289 = vunpack.c.l.b16 %v249
      %v290 = vunpack.c.l.b16 %v250
      %v291 = vunpack.c.l.b16 %v251
      %v292 = vunpack.c.l.b16 %v252
      %v293 = vunpack.c.l.b16 %v253
      %v294 = vunpack.c.l.b16 %v254
      %v295 = vunpack.c.l.b16 %v255
      %v296 = vpack.c.b16 %v281, %v280
      %v297 = vpack.c.b16 %v283, %v282
      %v298 = vpack.c.b16 %v285, %v284
      %v299 = vpack.c.b16 %v287, %v286
      %v300 = vpack.c.b16 %v289, %v288
      %v301 = vpack.c.b16 %v291, %v290
      %v302 = vpack.c.b16 %v293, %v292
      %v303 = vpack.c.b16 %v295, %v294
      %312 = vmatprep.subr.bf16.mxu0 0
      %313 = vmatpush1.bf16.msra.mxu0 %v296
      %314 = vmatprep.subr.bf16.mxu0 0
      %315 = vmatpush1.bf16.msra.mxu0 %v297
      %316 = vmatprep.subr.bf16.mxu0 0
      %317 = vmatpush1.bf16.msra.mxu0 %v298
      %318 = vmatprep.subr.bf16.mxu0 0
      %319 = vmatpush1.bf16.msra.mxu0 %v299
      %320 = vmatprep.subr.bf16.mxu0 0
      %321 = vmatpush1.bf16.msra.mxu0 %v300
      %322 = vmatprep.subr.bf16.mxu0 0
      %323 = vmatpush1.bf16.msra.mxu0 %v301
      %324 = vmatprep.subr.bf16.mxu0 0
      %325 = vmatpush1.bf16.msra.mxu0 %v302
      %326 = vmatprep.subr.bf16.mxu0 0
      %327 = vmatpush1.bf16.msra.mxu0 %v303
      %328 = vmatprep.subr.bf16.mxu0 0
      %329 = vmatpush1.bf16.msra.mxu0 0
      %330 = vmatprep.subr.bf16.mxu0 0
      %331 = vmatpush1.bf16.msra.mxu0 0
      %332 = vmatprep.subr.bf16.mxu0 0
      %333 = vmatpush1.bf16.msra.mxu0 0
      %334 = vmatprep.subr.bf16.mxu0 0
      %335 = vmatpush1.bf16.msra.mxu0 0
      %336 = vmatprep.subr.bf16.mxu0 0
      %337 = vmatpush1.bf16.msra.mxu0 0
      %338 = vmatprep.subr.bf16.mxu0 0
      %339 = vmatpush1.bf16.msra.mxu0 0
      %340 = vmatprep.subr.bf16.mxu0 0
      %341 = vmatpush1.bf16.msra.mxu0 0
      %342 = vmatprep.subr.bf16.mxu0 0
      %343 = vmatpush1.bf16.msra.mxu0 0
      %344 = vmatprep.mubr.bf16.mxu0 0
      %345 = vmatmul.mubr.bf16.gmra.mrb[0].mxu0 %v257
      %v346 = vpop.f32.mrb[0].mxu0
      %v347 = vadd.f32 %v262, %v346
      %v348 = vpop.f32.mrb[0].mxu0
      %v349 = vpop.f32.mrb[0].mxu0
      %v350 = vpop.f32.mrb[0].mxu0
      %351 = vdwg.mxu0
      %vm352 = vcmp.ge.f32.partialorder %v347, 0.0
      %v353 = vmul.f32 %v347, 0.1
      %v354 = vsel %vm352, %v347, %v353
      %v355 = vld [vmem:[#allocation9] sm:$0xf]
      %v356 = vld [vmem:[#allocation9 + $0x4] sm:$0xf]
      %v357 = vld [vmem:[#allocation9 + $0x8] sm:$0xf]
      %v358 = vld [vmem:[#allocation9 + $0xc] sm:$0xf]
      %v359 = vld [vmem:[#allocation9 + $0x10] sm:$0xf]
      %v360 = vld [vmem:[#allocation9 + $0x14] sm:$0xf]
      %v361 = vld [vmem:[#allocation9 + $0x18] sm:$0xf]
      %v362 = vld [vmem:[#allocation9 + $0x1c] sm:$0xf]
      %v363 = vld [vmem:[#allocation9 + $0x20] sm:$0xf]
      %v364 = vld [vmem:[#allocation9 + $0x24] sm:$0xf]
      %v365 = vld [vmem:[#allocation9 + $0x28] sm:$0xf]
      %v366 = vld [vmem:[#allocation9 + $0x2c] sm:$0xf]
      %v367 = vld [vmem:[#allocation9 + $0x30] sm:$0xf]
      %v368 = vld [vmem:[#allocation9 + $0x34] sm:$0xf]
      %v369 = vld [vmem:[#allocation9 + $0x38] sm:$0xf]
      %v370 = vld [vmem:[#allocation9 + $0x3c] sm:$0xf]
      %v371 = vld [vmem:[%s6] sm:$0x1]
      %v372 = vpack.c.bf16 %v354, %v354
      %v374 = vlaneseq
      %v375 = vshrl.u32 %v374, 7
      %v376 = vsub.s32 0, %v375
      %v377 = vrot.slane %v371, %v376
      %v395 = vunpack.c.l.b16 %v355
      %v396 = vunpack.c.l.b16 %v356
      %v397 = vunpack.c.l.b16 %v357
      %v398 = vunpack.c.l.b16 %v358
      %v399 = vunpack.c.l.b16 %v359
      %v400 = vunpack.c.l.b16 %v360
      %v401 = vunpack.c.l.b16 %v361
      %v402 = vunpack.c.l.b16 %v362
      %v403 = vunpack.c.l.b16 %v363
      %v404 = vunpack.c.l.b16 %v364
      %v405 = vunpack.c.l.b16 %v365
      %v406 = vunpack.c.l.b16 %v366
      %v407 = vunpack.c.l.b16 %v367
      %v408 = vunpack.c.l.b16 %v368
      %v409 = vunpack.c.l.b16 %v369
      %v410 = vunpack.c.l.b16 %v370
      %v411 = vpack.c.b16 %v396, %v395
      %v412 = vpack.c.b16 %v398, %v397
      %v413 = vpack.c.b16 %v400, %v399
      %v414 = vpack.c.b16 %v402, %v401
      %v415 = vpack.c.b16 %v404, %v403
      %v416 = vpack.c.b16 %v406, %v405
      %v417 = vpack.c.b16 %v408, %v407
      %v418 = vpack.c.b16 %v410, %v409
      %427 = vmatprep.subr.bf16.mxu0 0
      %428 = vmatpush1.bf16.msra.mxu0 %v411
      %429 = vmatprep.subr.bf16.mxu0 0
      %430 = vmatpush1.bf16.msra.mxu0 %v412
      %431 = vmatprep.subr.bf16.mxu0 0
      %432 = vmatpush1.bf16.msra.mxu0 %v413
      %433 = vmatprep.subr.bf16.mxu0 0
      %434 = vmatpush1.bf16.msra.mxu0 %v414
      %435 = vmatprep.subr.bf16.mxu0 0
      %436 = vmatpush1.bf16.msra.mxu0 %v415
      %437 = vmatprep.subr.bf16.mxu0 0
      %438 = vmatpush1.bf16.msra.mxu0 %v416
      %439 = vmatprep.subr.bf16.mxu0 0
      %440 = vmatpush1.bf16.msra.mxu0 %v417
      %441 = vmatprep.subr.bf16.mxu0 0
      %442 = vmatpush1.bf16.msra.mxu0 %v418
      %443 = vmatprep.subr.bf16.mxu0 0
      %444 = vmatpush1.bf16.msra.mxu0 0
      %445 = vmatprep.subr.bf16.mxu0 0
      %446 = vmatpush1.bf16.msra.mxu0 0
      %447 = vmatprep.subr.bf16.mxu0 0
      %448 = vmatpush1.bf16.msra.mxu0 0
      %449 = vmatprep.subr.bf16.mxu0 0
      %450 = vmatpush1.bf16.msra.mxu0 0
      %451 = vmatprep.subr.bf16.mxu0 0
      %452 = vmatpush1.bf16.msra.mxu0 0
      %453 = vmatprep.subr.bf16.mxu0 0
      %454 = vmatpush1.bf16.msra.mxu0 0
      %455 = vmatprep.subr.bf16.mxu0 0
      %456 = vmatpush1.bf16.msra.mxu0 0
      %457 = vmatprep.subr.bf16.mxu0 0
      %458 = vmatpush1.bf16.msra.mxu0 0
      %459 = vmatprep.mubr.bf16.mxu0 0
      %460 = vmatmul.mubr.bf16.gmra.mrb[0].mxu0 %v372
      %v461 = vpop.f32.mrb[0].mxu0
      %v462 = vadd.f32 %v377, %v461
      %v463 = vpop.f32.mrb[0].mxu0
      %v464 = vpop.f32.mrb[0].mxu0
      %v465 = vpop.f32.mrb[0].mxu0
      %466 = vdwg.mxu0
      %vm467 = vcmp.ge.f32.partialorder %v462, 0.0
      %v468 = vmul.f32 %v462, 0.1
      %v469 = vsel %vm467, %v462, %v468
      %v470 = vld [vmem:[#allocation11] sm:$0xf]
      %v471 = vld [vmem:[#allocation11 + $0x4] sm:$0xf]
      %v472 = vld [vmem:[#allocation11 + $0x8] sm:$0xf]
      %v473 = vld [vmem:[#allocation11 + $0xc] sm:$0xf]
      %v474 = vld [vmem:[#allocation11 + $0x10] sm:$0xf]
      %v475 = vld [vmem:[#allocation11 + $0x14] sm:$0xf]
      %v476 = vld [vmem:[#allocation11 + $0x18] sm:$0xf]
      %v477 = vld [vmem:[#allocation11 + $0x1c] sm:$0xf]
      %v478 = vld [vmem:[#allocation11 + $0x20] sm:$0xf]
      %v479 = vld [vmem:[#allocation11 + $0x24] sm:$0xf]
      %v480 = vld [vmem:[#allocation11 + $0x28] sm:$0xf]
      %v481 = vld [vmem:[#allocation11 + $0x2c] sm:$0xf]
      %v482 = vld [vmem:[#allocation11 + $0x30] sm:$0xf]
      %v483 = vld [vmem:[#allocation11 + $0x34] sm:$0xf]
      %v484 = vld [vmem:[#allocation11 + $0x38] sm:$0xf]
      %v485 = vld [vmem:[#allocation11 + $0x3c] sm:$0xf]
      %v486 = vld [vmem:[%s8] sm:$0x1]
      %v487 = vpack.c.bf16 %v469, %v469
      %v489 = vlaneseq
      %v490 = vshrl.u32 %v489, 7
      %v491 = vsub.s32 0, %v490
      %v492 = vrot.slane %v486, %v491
      %v510 = vunpack.c.l.b16 %v470
      %v511 = vunpack.c.l.b16 %v471
      %v512 = vunpack.c.l.b16 %v472
      %v513 = vunpack.c.l.b16 %v473
      %v514 = vunpack.c.l.b16 %v474
      %v515 = vunpack.c.l.b16 %v475
      %v516 = vunpack.c.l.b16 %v476
      %v517 = vunpack.c.l.b16 %v477
      %v518 = vunpack.c.l.b16 %v478
      %v519 = vunpack.c.l.b16 %v479
      %v520 = vunpack.c.l.b16 %v480
      %v521 = vunpack.c.l.b16 %v481
      %v522 = vunpack.c.l.b16 %v482
      %v523 = vunpack.c.l.b16 %v483
      %v524 = vunpack.c.l.b16 %v484
      %v525 = vunpack.c.l.b16 %v485
      %v526 = vpack.c.b16 %v511, %v510
      %v527 = vpack.c.b16 %v513, %v512
      %v528 = vpack.c.b16 %v515, %v514
      %v529 = vpack.c.b16 %v517, %v516
      %v530 = vpack.c.b16 %v519, %v518
      %v531 = vpack.c.b16 %v521, %v520
      %v532 = vpack.c.b16 %v523, %v522
      %v533 = vpack.c.b16 %v525, %v524
      %542 = vmatprep.subr.bf16.mxu0 0
      %543 = vmatpush1.bf16.msra.mxu0 %v526
      %544 = vmatprep.subr.bf16.mxu0 0
      %545 = vmatpush1.bf16.msra.mxu0 %v527
      %546 = vmatprep.subr.bf16.mxu0 0
      %547 = vmatpush1.bf16.msra.mxu0 %v528
      %548 = vmatprep.subr.bf16.mxu0 0
      %549 = vmatpush1.bf16.msra.mxu0 %v529
      %550 = vmatprep.subr.bf16.mxu0 0
      %551 = vmatpush1.bf16.msra.mxu0 %v530
      %552 = vmatprep.subr.bf16.mxu0 0
      %553 = vmatpush1.bf16.msra.mxu0 %v531
      %554 = vmatprep.subr.bf16.mxu0 0
      %555 = vmatpush1.bf16.msra.mxu0 %v532
      %556 = vmatprep.subr.bf16.mxu0 0
      %557 = vmatpush1.bf16.msra.mxu0 %v533
      %558 = vmatprep.subr.bf16.mxu0 0
      %559 = vmatpush1.bf16.msra.mxu0 0
      %560 = vmatprep.subr.bf16.mxu0 0
      %561 = vmatpush1.bf16.msra.mxu0 0
      %562 = vmatprep.subr.bf16.mxu0 0
      %563 = vmatpush1.bf16.msra.mxu0 0
      %564 = vmatprep.subr.bf16.mxu0 0
      %565 = vmatpush1.bf16.msra.mxu0 0
      %566 = vmatprep.subr.bf16.mxu0 0
      %567 = vmatpush1.bf16.msra.mxu0 0
      %568 = vmatprep.subr.bf16.mxu0 0
      %569 = vmatpush1.bf16.msra.mxu0 0
      %570 = vmatprep.subr.bf16.mxu0 0
      %571 = vmatpush1.bf16.msra.mxu0 0
      %572 = vmatprep.subr.bf16.mxu0 0
      %573 = vmatpush1.bf16.msra.mxu0 0
      %574 = vmatprep.mubr.bf16.mxu0 0
      %575 = vmatmul.mubr.bf16.gmra.mrb[0].mxu0 %v487
      %v576 = vpop.f32.mrb[0].mxu0
      %v577 = vadd.f32 %v492, %v576
      %v578 = vpop.f32.mrb[0].mxu0
      %v579 = vpop.f32.mrb[0].mxu0
      %v580 = vpop.f32.mrb[0].mxu0
      %581 = vdwg.mxu0
      %v582 = vtanh.pop %v577
      %583 = vst [vmem:[#allocation2] sm:$0xff] %v582
    $region73: #{tpu_custom_call.1} parent=1 // pred_fallthru
      _
    %v584 = vld [vmem:[#allocation12] sm:$0xf]
    %v585 = vld [vmem:[#allocation12 + $0x4] sm:$0xf]
    %v586 = vld [vmem:[#allocation12 + $0x8] sm:$0xf]
    %v587 = vld [vmem:[#allocation12 + $0xc] sm:$0xf]
    %v588 = vld [vmem:[#allocation12 + $0x10] sm:$0xf]
    %v589 = vld [vmem:[#allocation12 + $0x14] sm:$0xf]
    %v590 = vld [vmem:[#allocation12 + $0x18] sm:$0xf]
    %v591 = vld [vmem:[#allocation12 + $0x1c] sm:$0xf]
    %v592 = vld [vmem:[#allocation12 + $0x20] sm:$0xf]
    %v593 = vld [vmem:[#allocation12 + $0x24] sm:$0xf]
    %v594 = vld [vmem:[#allocation12 + $0x28] sm:$0xf]
    %v595 = vld [vmem:[#allocation12 + $0x2c] sm:$0xf]
    %v596 = vld [vmem:[#allocation12 + $0x30] sm:$0xf]
    %v597 = vld [vmem:[#allocation12 + $0x34] sm:$0xf]
    %v598 = vld [vmem:[#allocation12 + $0x38] sm:$0xf]
    %v599 = vld [vmem:[#allocation12 + $0x3c] sm:$0xf]
    %v600 = vld [vmem:[%s10] sm:$0x1]
    %v601 = vld [vmem:[#allocation2] sm:$0xff]
    %v602 = vpack.c.bf16 %v601, %v601
    %v604 = vlaneseq
    %v605 = vshrl.u32 %v604, 7
    %v606 = vsub.s32 0, %v605
    %v607 = vrot.slane %v600, %v606
    %v625 = vunpack.c.l.b16 %v584
    %v626 = vunpack.c.l.b16 %v585
    %v627 = vunpack.c.l.b16 %v586
    %v628 = vunpack.c.l.b16 %v587
    %v629 = vunpack.c.l.b16 %v588
    %v630 = vunpack.c.l.b16 %v589
    %v631 = vunpack.c.l.b16 %v590
    %v632 = vunpack.c.l.b16 %v591
    %v633 = vunpack.c.l.b16 %v592
    %v634 = vunpack.c.l.b16 %v593
    %v635 = vunpack.c.l.b16 %v594
    %v636 = vunpack.c.l.b16 %v595
    %v637 = vunpack.c.l.b16 %v596
    %v638 = vunpack.c.l.b16 %v597
    %v639 = vunpack.c.l.b16 %v598
    %v640 = vunpack.c.l.b16 %v599
    %v641 = vpack.c.b16 %v626, %v625
    %v642 = vpack.c.b16 %v628, %v627
    %v643 = vpack.c.b16 %v630, %v629
    %v644 = vpack.c.b16 %v632, %v631
    %v645 = vpack.c.b16 %v634, %v633
    %v646 = vpack.c.b16 %v636, %v635
    %v647 = vpack.c.b16 %v638, %v637
    %v648 = vpack.c.b16 %v640, %v639
    %657 = vmatprep.subr.bf16.mxu0 0
    %658 = vmatpush1.bf16.msra.mxu0 %v641
    %659 = vmatprep.subr.bf16.mxu0 0
    %660 = vmatpush1.bf16.msra.mxu0 %v642
    %661 = vmatprep.subr.bf16.mxu0 0
    %662 = vmatpush1.bf16.msra.mxu0 %v643
    %663 = vmatprep.subr.bf16.mxu0 0
    %664 = vmatpush1.bf16.msra.mxu0 %v644
    %665 = vmatprep.subr.bf16.mxu0 0
    %666 = vmatpush1.bf16.msra.mxu0 %v645
    %667 = vmatprep.subr.bf16.mxu0 0
    %668 = vmatpush1.bf16.msra.mxu0 %v646
    %669 = vmatprep.subr.bf16.mxu0 0
    %670 = vmatpush1.bf16.msra.mxu0 %v647
    %671 = vmatprep.subr.bf16.mxu0 0
    %672 = vmatpush1.bf16.msra.mxu0 %v648
    %673 = vmatprep.subr.bf16.mxu0 0
    %674 = vmatpush1.bf16.msra.mxu0 0
    %675 = vmatprep.subr.bf16.mxu0 0
    %676 = vmatpush1.bf16.msra.mxu0 0
    %677 = vmatprep.subr.bf16.mxu0 0
    %678 = vmatpush1.bf16.msra.mxu0 0
    %679 = vmatprep.subr.bf16.mxu0 0
    %680 = vmatpush1.bf16.msra.mxu0 0
    %681 = vmatprep.subr.bf16.mxu0 0
    %682 = vmatpush1.bf16.msra.mxu0 0
    %683 = vmatprep.subr.bf16.mxu0 0
    %684 = vmatpush1.bf16.msra.mxu0 0
    %685 = vmatprep.subr.bf16.mxu0 0
    %686 = vmatpush1.bf16.msra.mxu0 0
    %687 = vmatprep.subr.bf16.mxu0 0
    %688 = vmatpush1.bf16.msra.mxu0 0
    %689 = vmatprep.mubr.bf16.mxu0 0
    %690 = vmatmul.mubr.bf16.gmra.mrb[0].mxu0 %v602
    %v691 = vpop.f32.mrb[0].mxu0
    %v692 = vadd.f32 %v607, %v691
    %v693 = vpop.f32.mrb[0].mxu0
    %v694 = vpop.f32.mrb[0].mxu0
    %v695 = vpop.f32.mrb[0].mxu0
    %696 = vdwg.mxu0
    %697 = vst [vmem:[#allocation14] sm:$0xff] %v692
    // Predicated region
    $region74: #{tpu_custom_call.1} parent=1 // pred_check
      _
    $region75: #{tpu_custom_call.1} parent=1 // pred_check_branch
      %699 = sbr.rel (0) target = $region77
    $region76: #{tpu_custom_call.1} parent=1 // pred_region
      %s701 = ssub.s32 128, 128
      %702 = vsyncadd [#allocation5], %s701
      %s704 = sshll.u32 [#allocation14], 4
      %s705 = int_to_ptr.vmem [resolvable:$true] %s704
      %707 = dma.vmem_to_hbm [thread:$0]  %s705, 128, %s11, [#allocation5]
    $region77: #{tpu_custom_call.1} parent=1 // pred_fallthru
      _
    // Predicated region
    $region78: #{tpu_custom_call.1} parent=1 // pred_check
      _
    $region79: #{tpu_custom_call.1} parent=1 // pred_check_branch
      %709 = sbr.rel (0) target = $region81
    $region80: #{tpu_custom_call.1} parent=1 // pred_region
      %710 = dma.done [#allocation5], 128
    $region81: #{tpu_custom_call.1} parent=1 // pred_fallthru
      _
    %711 = vsyncpa [#allocation4], 1
    %712 = vsyncpa [#allocation7], 1
    %713 = vsyncpa [#allocation10], 1
    %714 = vsyncpa [#allocation13], 1
    %715 = vsyncpa [#allocation5], 1

</llo_original>
